<compile_context>
chip_gen: v6e
topology: v6e:2x2x1
jax: 0.10.0
libtpu: 0.0.40
codegen_flags: <defaults>
</compile_context>

<pallas_src>
import functools

import jax
import jax.numpy as jnp
from jax import lax
from jax.experimental import pallas as pl
from jax.experimental.pallas import tpu as pltpu


def _round_up(n, m):
    return pl.cdiv(n, m) * m


def final_layer_kernel(x_ref, c_ref, w_ada_ref, b_ada_ref,
                       w_lin_ref, b_lin_ref, o_ref, *, inv_c):
    x = x_ref[...].astype(jnp.float32)            # (tm, Cp)  f32 for VPU math
    c = c_ref[...].astype(jnp.float32)            # (tm, Cp)

    Cp = x.shape[-1]

    # adaLN modulation: SiLU(c) @ W_ada + b_ada  -> (tm, 2*Cp), bf16 MXU op.
    # TODO(synk): if c is per-sample (broadcast over sequence, standard DiT),
    # hoist this matmul out of the per-token grid and feed shift/scale in.
    c_silu = (c * jax.nn.sigmoid(c)).astype(jnp.bfloat16)
    ada = jnp.dot(c_silu, w_ada_ref[...],
                  preferred_element_type=jnp.float32) + b_ada_ref[...]
    shift = ada[:, :Cp]                           # tile-aligned (Cp % 128 == 0)
    scale = ada[:, Cp:]

    # LayerNorm (no affine, eps=1e-6) — single-pass stats over the true C
    # channels; padded lanes are zero so they don't perturb the sums.
    s1 = jnp.sum(x, axis=-1, keepdims=True)
    s2 = jnp.sum(x * x, axis=-1, keepdims=True)
    mean = s1 * inv_c
    var = s2 * inv_c - mean * mean
    xn = (x - mean) * lax.rsqrt(var + 1e-6)

    # modulate, then final linear on the MXU in bf16 (f32 accumulation).
    xm = (xn * (1.0 + scale) + shift).astype(jnp.bfloat16)
    out = jnp.dot(xm, w_lin_ref[...],
                  preferred_element_type=jnp.float32) + b_lin_ref[...]
    o_ref[...] = out.astype(o_ref.dtype)


def final_layer(x, c, w_ada, b_ada, w_lin, b_lin, *, tm=256):
    """x, c: [..., C].  w_ada: [C, 2C], b_ada: [1, 2C], w_lin: [C, out], b_lin: [1, out]."""
    lead = x.shape[:-1]
    C = x.shape[-1]
    out_ch = w_lin.shape[1]

    x2 = x.reshape(-1, C)
    c2 = c.reshape(-1, C)
    N = x2.shape[0]

    # Hardware-friendly padded shapes: rows -> multiple of tm, channels and
    # output -> multiples of 128 (lane-dense loads/stores, aligned chunk).
    Np = _round_up(max(N, 8), tm)
    Cp = _round_up(C, 128)
    Op = _round_up(out_ch, 128)

    xp = jnp.zeros((Np, Cp), x2.dtype).at[:N, :C].set(x2)
    cp = jnp.zeros((Np, Cp), c2.dtype).at[:N, :C].set(c2)

    # Split w_ada/b_ada into shift/scale halves so each half is padded to Cp
    # independently; the in-kernel chunk boundary is then 128-aligned.
    w_shift, w_scale = w_ada[:, :C], w_ada[:, C:]
    b_shift, b_scale = b_ada[:, :C], b_ada[:, C:]
    w_ada_p = jnp.zeros((Cp, 2 * Cp), jnp.bfloat16)
    w_ada_p = w_ada_p.at[:C, :C].set(w_shift.astype(jnp.bfloat16))
    w_ada_p = w_ada_p.at[:C, Cp:Cp + C].set(w_scale.astype(jnp.bfloat16))
    b_ada_p = jnp.zeros((1, 2 * Cp), jnp.float32)
    b_ada_p = b_ada_p.at[:, :C].set(b_shift.astype(jnp.float32))
    b_ada_p = b_ada_p.at[:, Cp:Cp + C].set(b_scale.astype(jnp.float32))

    w_lin_p = jnp.zeros((Cp, Op), jnp.bfloat16).at[:C, :out_ch].set(
        w_lin.astype(jnp.bfloat16))
    b_lin_p = jnp.zeros((1, Op), jnp.float32).at[:, :out_ch].set(
        b_lin.astype(jnp.float32))

    # Explicit VMEM budget: x/c/out tiles double-buffered plus bf16 weights,
    # with 2x headroom, capped at 32 MiB (safe on v5e/v6e/v7x alike).
    tile_bytes = (2 * (2 * tm * Cp * 4)                 # x, c (f32, 2 buffers)
                  + 2 * tm * Op * 4                     # out (f32, 2 buffers)
                  + 2 * (Cp * 2 * Cp + Cp * Op) * 2     # bf16 weights, 2 buffers
                  + 2 * (2 * Cp + Op) * 4)              # biases
    vmem_bytes = int(min(max(2 * tile_bytes, 4 << 20), 32 << 20))

    grid = (Np // tm,)
    out_p = pl.pallas_call(
        functools.partial(final_layer_kernel, inv_c=1.0 / C),
        out_shape=jax.ShapeDtypeStruct((Np, Op), x.dtype),
        grid_spec=pltpu.PrefetchScalarGridSpec(
            num_scalar_prefetch=0,
            grid=grid,
            in_specs=[
                pl.BlockSpec((tm, Cp), lambda i: (i, 0)),       # x tile
                pl.BlockSpec((tm, Cp), lambda i: (i, 0)),       # c tile
                pl.BlockSpec((Cp, 2 * Cp), lambda i: (0, 0)),   # w_ada (resident)
                pl.BlockSpec((1, 2 * Cp), lambda i: (0, 0)),    # b_ada
                pl.BlockSpec((Cp, Op), lambda i: (0, 0)),       # w_lin (resident)
                pl.BlockSpec((1, Op), lambda i: (0, 0)),        # b_lin
            ],
            out_specs=pl.BlockSpec((tm, Op), lambda i: (i, 0)),
        ),
        compiler_params=pltpu.CompilerParams(
            dimension_semantics=("parallel",),
            vmem_limit_bytes=vmem_bytes),
    )(xp, cp, w_ada_p, b_ada_p, w_lin_p, b_lin_p)

    return out_p[:N, :out_ch].reshape(*lead, out_ch)


def final_layer_ref(x, c, w_ada, b_ada, w_lin, b_lin):
    """Pure-JAX f32 reference mirroring the PyTorch module."""
    C = x.shape[-1]
    ada = (c * jax.nn.sigmoid(c)) @ w_ada + b_ada
    shift, scale = ada[..., :C], ada[..., C:]
    mean = jnp.mean(x, axis=-1, keepdims=True)
    var = jnp.mean((x - mean) ** 2, axis=-1, keepdims=True)
    xn = (x - mean) * lax.rsqrt(var + 1e-6)
    return (xn * (1.0 + scale) + shift) @ w_lin + b_lin


if __name__ == "__main__":
    model_channels = 32
    out_channels = 16
    batch, seq = 2, 8

    key = jax.random.PRNGKey(0)
    kx, kc, k1, k2, k3, k4 = jax.random.split(key, 6)

    # deterministic synthetic inputs / parameters (per-token conditioning c,
    # matching the module's shape contract)
    x = jax.random.normal(kx, (batch, seq, model_channels), dtype=jnp.float32)
    c = jax.random.normal(kc, (batch, seq, model_channels), dtype=jnp.float32)

    # nn.Linear weights pre-transposed to [in, out]
    w_ada = jax.random.normal(k1, (model_channels, 2 * model_channels),
                              dtype=jnp.float32) * 0.02
    b_ada = jax.random.normal(k2, (1, 2 * model_channels),
                              dtype=jnp.float32) * 0.02
    w_lin = jax.random.normal(k3, (model_channels, out_channels),
                              dtype=jnp.float32) * 0.02
    b_lin = jax.random.normal(k4, (1, out_channels),
                              dtype=jnp.float32) * 0.02

    out = final_layer(x, c, w_ada, b_ada, w_lin, b_lin)
    out = jax.block_until_ready(out)

    ref = final_layer_ref(x, c, w_ada, b_ada, w_lin, b_lin)
    assert out.shape == (batch, seq, out_channels)
    # bf16 MXU operands -> slightly looser tolerance than a pure-f32 kernel.
    assert jnp.allclose(out, ref, atol=1e-2, rtol=1e-2), (
        float(jnp.max(jnp.abs(out - ref))))

    print("KERNEL_OK")
</pallas_src>

<mosaic_0001>
module attributes {stable_mosaic.version = 11 : i64} {
  func.func @final_layer_kernel(%arg0: i32, %arg1: memref<256x128xf32, #tpu.memory_space<vmem>>, %arg2: memref<256x128xf32, #tpu.memory_space<vmem>>, %arg3: memref<128x256xbf16, #tpu.memory_space<vmem>>, %arg4: memref<1x256xf32, #tpu.memory_space<vmem>>, %arg5: memref<128x128xbf16, #tpu.memory_space<vmem>>, %arg6: memref<1x128xf32, #tpu.memory_space<vmem>>, %arg7: memref<256x128xf32, #tpu.memory_space<vmem>>) attributes {dimension_semantics = [#tpu.dimension_semantics<parallel>], iteration_bounds = array<i64: 1>, scalar_prefetch = 0 : i64, scratch_operands = 0 : i64, tpu.core_type = #tpu.core_type<tc>, window_params = [{transform_indices = @transform_0, window_bounds = array<i64: 256, 128>}, {transform_indices = @transform_1, window_bounds = array<i64: 256, 128>}, {pipeline_mode = #tpu.pipeline_mode<synchronous>, transform_indices = @transform_2, window_bounds = array<i64: 128, 256>}, {pipeline_mode = #tpu.pipeline_mode<synchronous>, transform_indices = @transform_3, window_bounds = array<i64: 1, 256>}, {pipeline_mode = #tpu.pipeline_mode<synchronous>, transform_indices = @transform_4, window_bounds = array<i64: 128, 128>}, {pipeline_mode = #tpu.pipeline_mode<synchronous>, transform_indices = @transform_5, window_bounds = array<i64: 1, 128>}, {transform_indices = @transform_6, window_bounds = array<i64: 256, 128>}]} {
    %c0 = arith.constant 0 : index
    %c0_0 = arith.constant 0 : index
    %0 = vector.load %arg1[%c0, %c0_0] : memref<256x128xf32, #tpu.memory_space<vmem>>, vector<256x128xf32>
    %c0_1 = arith.constant 0 : index
    %c0_2 = arith.constant 0 : index
    %1 = vector.load %arg2[%c0_1, %c0_2] : memref<256x128xf32, #tpu.memory_space<vmem>>, vector<256x128xf32>
    %2 = arith.negf %1 : vector<256x128xf32>
    %3 = math.exp %2 : vector<256x128xf32>
    %cst = arith.constant 1.000000e+00 : f32
    %4 = vector.broadcast %cst : f32 to vector<256x128xf32>
    %5 = arith.addf %4, %3 : vector<256x128xf32>
    %6 = arith.divf %4, %5 : vector<256x128xf32>
    %7 = arith.mulf %1, %6 : vector<256x128xf32>
    %8 = arith.truncf %7 : vector<256x128xf32> to vector<256x128xbf16>
    %c0_3 = arith.constant 0 : index
    %c0_4 = arith.constant 0 : index
    %9 = vector.load %arg3[%c0_3, %c0_4] : memref<128x256xbf16, #tpu.memory_space<vmem>>, vector<128x256xbf16>
    %cst_5 = arith.constant dense<0.000000e+00> : vector<256x256xf32>
    %10 = tpu.matmul %8, %9, %cst_5 {dimension_numbers = #tpu.dot_dimension_numbers<[1], [0], [0], [1], [0, 0, 1, 1], [], []>} : vector<256x128xbf16>, vector<128x256xbf16>, vector<256x256xf32> -> vector<256x256xf32>
    %c0_6 = arith.constant 0 : index
    %c0_7 = arith.constant 0 : index
    %11 = vector.load %arg4[%c0_6, %c0_7] : memref<1x256xf32, #tpu.memory_space<vmem>>, vector<1x256xf32>
    %12 = vector.broadcast %11 : vector<1x256xf32> to vector<256x256xf32>
    %13 = arith.addf %10, %12 : vector<256x256xf32>
    %14 = vector.extract_strided_slice %13 {offsets = [0, 0], sizes = [256, 128], strides = [1, 1]} : vector<256x256xf32> to vector<256x128xf32>
    %15 = vector.extract_strided_slice %13 {offsets = [0, 128], sizes = [256, 128], strides = [1, 1]} : vector<256x256xf32> to vector<256x128xf32>
    %cst_8 = arith.constant dense<0.000000e+00> : vector<256xf32>
    %16 = vector.multi_reduction <add>, %0, %cst_8 [1] : vector<256x128xf32> to vector<256xf32>
    %17 = vector.shape_cast %16 : vector<256xf32> to vector<256x1xf32>
    %18 = arith.mulf %0, %0 : vector<256x128xf32>
    %cst_9 = arith.constant dense<0.000000e+00> : vector<256xf32>
    %19 = vector.multi_reduction <add>, %18, %cst_9 [1] : vector<256x128xf32> to vector<256xf32>
    %20 = vector.shape_cast %19 : vector<256xf32> to vector<256x1xf32>
    %cst_10 = arith.constant 3.125000e-02 : f32
    %21 = vector.broadcast %cst_10 : f32 to vector<256x1xf32>
    %22 = arith.mulf %17, %21 : vector<256x1xf32>
    %cst_11 = arith.constant 3.125000e-02 : f32
    %23 = vector.broadcast %cst_11 : f32 to vector<256x1xf32>
    %24 = arith.mulf %20, %23 : vector<256x1xf32>
    %25 = arith.mulf %22, %22 : vector<256x1xf32>
    %26 = arith.subf %24, %25 : vector<256x1xf32>
    %27 = vector.broadcast %22 : vector<256x1xf32> to vector<256x128xf32>
    %28 = arith.subf %0, %27 : vector<256x128xf32>
    %cst_12 = arith.constant 9.99999997E-7 : f32
    %29 = vector.broadcast %cst_12 : f32 to vector<256x1xf32>
    %30 = arith.addf %26, %29 : vector<256x1xf32>
    %31 = math.rsqrt %30 : vector<256x1xf32>
    %32 = vector.broadcast %31 : vector<256x1xf32> to vector<256x128xf32>
    %33 = arith.mulf %28, %32 : vector<256x128xf32>
    %cst_13 = arith.constant 1.000000e+00 : f32
    %34 = vector.broadcast %cst_13 : f32 to vector<256x128xf32>
    %35 = arith.addf %34, %15 : vector<256x128xf32>
    %36 = arith.mulf %33, %35 : vector<256x128xf32>
    %37 = arith.addf %36, %14 : vector<256x128xf32>
    %38 = arith.truncf %37 : vector<256x128xf32> to vector<256x128xbf16>
    %c0_14 = arith.constant 0 : index
    %c0_15 = arith.constant 0 : index
    %39 = vector.load %arg5[%c0_14, %c0_15] : memref<128x128xbf16, #tpu.memory_space<vmem>>, vector<128x128xbf16>
    %cst_16 = arith.constant dense<0.000000e+00> : vector<256x128xf32>
    %40 = tpu.matmul %38, %39, %cst_16 {dimension_numbers = #tpu.dot_dimension_numbers<[1], [0], [0], [1], [0, 0, 1, 1], [], []>} : vector<256x128xbf16>, vector<128x128xbf16>, vector<256x128xf32> -> vector<256x128xf32>
    %c0_17 = arith.constant 0 : index
    %c0_18 = arith.constant 0 : index
    %41 = vector.load %arg6[%c0_17, %c0_18] : memref<1x128xf32, #tpu.memory_space<vmem>>, vector<1x128xf32>
    %42 = vector.broadcast %41 : vector<1x128xf32> to vector<256x128xf32>
    %43 = arith.addf %40, %42 : vector<256x128xf32>
    %c0_19 = arith.constant 0 : index
    %c0_20 = arith.constant 0 : index
    %44 = vector.load %arg7[%c0_19, %c0_20] : memref<256x128xf32, #tpu.memory_space<vmem>>, vector<256x128xf32>
    tpu.vector_store %arg7[%c0_19, %c0_20], %43 {strides = array<i32>} : memref<256x128xf32, #tpu.memory_space<vmem>>, vector<256x128xf32>,
    return
  }
  func.func @transform_0(%arg0: i32) -> (i32, i32) {
    %c0_i32 = arith.constant 0 : i32
    %c0_i32_0 = arith.constant 0 : i32
    return %arg0, %c0_i32 : i32, i32
  }
  func.func @transform_1(%arg0: i32) -> (i32, i32) {
    %c0_i32 = arith.constant 0 : i32
    %c0_i32_0 = arith.constant 0 : i32
    return %arg0, %c0_i32 : i32, i32
  }
  func.func @transform_2(%arg0: i32) -> (i32, i32) {
    %c0_i32 = arith.constant 0 : i32
    %c0_i32_0 = arith.constant 0 : i32
    %c0_i32_1 = arith.constant 0 : i32
    return %c0_i32, %c0_i32_0 : i32, i32
  }
  func.func @transform_3(%arg0: i32) -> (i32, i32) {
    %c0_i32 = arith.constant 0 : i32
    %c0_i32_0 = arith.constant 0 : i32
    %c0_i32_1 = arith.constant 0 : i32
    return %c0_i32, %c0_i32_0 : i32, i32
  }
  func.func @transform_4(%arg0: i32) -> (i32, i32) {
    %c0_i32 = arith.constant 0 : i32
    %c0_i32_0 = arith.constant 0 : i32
    %c0_i32_1 = arith.constant 0 : i32
    return %c0_i32, %c0_i32_0 : i32, i32
  }
  func.func @transform_5(%arg0: i32) -> (i32, i32) {
    %c0_i32 = arith.constant 0 : i32
    %c0_i32_0 = arith.constant 0 : i32
    %c0_i32_1 = arith.constant 0 : i32
    return %c0_i32, %c0_i32_0 : i32, i32
  }
  func.func @transform_6(%arg0: i32) -> (i32, i32) {
    %c0_i32 = arith.constant 0 : i32
    %c0_i32_0 = arith.constant 0 : i32
    return %arg0, %c0_i32 : i32, i32
  }
}

</mosaic_0001>

<llo_original>
// kernel: tpu_custom_call.1
$region0: #{tpu_custom_call.1}
  #allocation0 [shape = 'u32[]', space=smem, size = 0x4, offset = 0x4, fixed_abs, tag = 'smem constant byte address 0x4 - core index']
  #allocation1 [shape = 'u32[144,128]{1,0:T(1,128)}', space=vmem, size = 0x12000, scoped, tag = 'internal scratch']
  %s0 = inlined_call_operand.hbm [shape: f32[256,128], index: 0, kind: input, shape index: {}]
  %s1 = inlined_call_operand.hbm [shape: f32[256,128], index: 1, kind: input, shape index: {}]
  %s2 = inlined_call_operand.hbm [shape: bf16[128,256], index: 2, kind: input, shape index: {}]
  %s3 = inlined_call_operand.vmem [shape: f32[1,256], index: 3, kind: input, shape index: {}]
  %s4 = inlined_call_operand.hbm [shape: bf16[128,128], index: 4, kind: input, shape index: {}]
  %s5 = inlined_call_operand.vmem [shape: f32[1,128], index: 5, kind: input, shape index: {}]
  %s6 = inlined_call_operand.hbm [shape: f32[256,128], index: 6, kind: output, shape index: {}]
  %s7 = sld [smem:[#allocation0]]
  $region50: #{tpu_custom_call.1} parent=0
    _
  %s9 = ssub.s32 1, %s7
  %s10 = scalar_select 0, %s9, %s7
  $region1: #{tpu_custom_call.1} parent=0
    #allocation2 [shape = 'u8[131072]{0}', space=vmem, size = 0x20000, scoped, tag = 'input window, operand 0, single buffered']
    #allocation3 [shape = 's32[1]{0}', space=sflag, size = 0x4, scoped, tag = 'scoped memory for tpu_custom_call.1']
    #allocation4 [shape = 's32[1]{0}', space=sflag, size = 0x4, scoped, tag = 'scoped memory for tpu_custom_call.1']
    #allocation5 [shape = 'u8[131072]{0}', space=vmem, size = 0x20000, scoped, tag = 'input window, operand 1, single buffered']
    #allocation6 [shape = 's32[1]{0}', space=sflag, size = 0x4, scoped, tag = 'scoped memory for tpu_custom_call.1']
    #allocation7 [shape = 'u8[65536]{0}', space=vmem, size = 0x10000, scoped, tag = 'input window, operand 2, single buffered']
    #allocation8 [shape = 'u8[32768]{0}', space=vmem, size = 0x8000, scoped, tag = 'input window, operand 4, single buffered']
    #allocation9 [shape = 's32[1]{0}', space=sflag, size = 0x4, scoped, tag = 'scoped memory for tpu_custom_call.1']
    #allocation10 [shape = 'u8[131072]{0}', space=vmem, size = 0x20000, scoped, tag = 'output window, operand 0, single buffered']
    %11 = vsyncpa [#allocation3], 0
    %12 = vsyncpa [#allocation6], 0
    %13 = vsyncpa [#allocation9], 0
    %14 = vsyncpa [#allocation4], 0
    // Predicated region
    $region2: #{tpu_custom_call.1} parent=1 // pred_check
      _
    $region3: #{tpu_custom_call.1} parent=1 // pred_check_branch
      %16 = sbr.rel (0) target = $region5
    $region4: #{tpu_custom_call.1} parent=1 // pred_region
      %s18 = ssub.s32 4096, 4096
      %19 = vsyncadd [#allocation3], %s18
      %s20 = sshll.u32 [#allocation2], 4
      %s21 = int_to_ptr.vmem [resolvable:$true] %s20
      %26 = dma.hbm_to_vmem [thread:$0]  %s0, 4096, %s21, [#allocation3], 128, 128, 8
    $region5: #{tpu_custom_call.1} parent=1 // pred_fallthru
      _
    // Predicated region
    $region6: #{tpu_custom_call.1} parent=1 // pred_check
      _
    $region7: #{tpu_custom_call.1} parent=1 // pred_check_branch
      %28 = sbr.rel (0) target = $region9
    $region8: #{tpu_custom_call.1} parent=1 // pred_region
      %s30 = ssub.s32 4096, 4096
      %31 = vsyncadd [#allocation6], %s30
      %s32 = sshll.u32 [#allocation5], 4
      %s33 = int_to_ptr.vmem [resolvable:$true] %s32
      %38 = dma.hbm_to_vmem [thread:$0]  %s1, 4096, %s33, [#allocation6], 128, 128, 8
    $region9: #{tpu_custom_call.1} parent=1 // pred_fallthru
      _
    // Predicated region
    $region10: #{tpu_custom_call.1} parent=1 // pred_check
      _
    $region11: #{tpu_custom_call.1} parent=1 // pred_check_branch
      %40 = sbr.rel (0) target = $region13
    $region12: #{tpu_custom_call.1} parent=1 // pred_region
      %s42 = ssub.s32 2048, 2048
      %43 = vsyncadd [#allocation6], %s42
      %s44 = sshll.u32 [#allocation7], 4
      %s45 = int_to_ptr.vmem [resolvable:$true] %s44
      %50 = dma.hbm_to_vmem [thread:$0]  %s2, 2048, %s45, [#allocation6], 128, 128, 8
    $region13: #{tpu_custom_call.1} parent=1 // pred_fallthru
      _
    // Predicated region
    $region14: #{tpu_custom_call.1} parent=1 // pred_check
      _
    $region15: #{tpu_custom_call.1} parent=1 // pred_check_branch
      %52 = sbr.rel (0) target = $region17
    $region16: #{tpu_custom_call.1} parent=1 // pred_region
      _
    $region17: #{tpu_custom_call.1} parent=1 // pred_fallthru
      _
    // Predicated region
    $region18: #{tpu_custom_call.1} parent=1 // pred_check
      _
    $region19: #{tpu_custom_call.1} parent=1 // pred_check_branch
      %54 = sbr.rel (0) target = $region21
    $region20: #{tpu_custom_call.1} parent=1 // pred_region
      %s56 = ssub.s32 1024, 1024
      %57 = vsyncadd [#allocation9], %s56
      %s58 = sshll.u32 [#allocation8], 4
      %s59 = int_to_ptr.vmem [resolvable:$true] %s58
      %64 = dma.hbm_to_vmem [thread:$0]  %s4, 1024, %s59, [#allocation9], 64, 64, 4
    $region21: #{tpu_custom_call.1} parent=1 // pred_fallthru
      _
    // Predicated region
    $region22: #{tpu_custom_call.1} parent=1 // pred_check
      _
    $region23: #{tpu_custom_call.1} parent=1 // pred_check_branch
      %66 = sbr.rel (0) target = $region25
    $region24: #{tpu_custom_call.1} parent=1 // pred_region
      _
    $region25: #{tpu_custom_call.1} parent=1 // pred_fallthru
      _
    // Predicated region
    $region26: #{tpu_custom_call.1} parent=1 // pred_check
      _
    $region27: #{tpu_custom_call.1} parent=1 // pred_check_branch
      %68 = sbr.rel (0) target = $region29
    $region28: #{tpu_custom_call.1} parent=1 // pred_region
      %69 = dma.done [#allocation3], 4096
    $region29: #{tpu_custom_call.1} parent=1 // pred_fallthru
      _
    // Predicated region
    $region30: #{tpu_custom_call.1} parent=1 // pred_check
      _
    $region31: #{tpu_custom_call.1} parent=1 // pred_check_branch
      %71 = sbr.rel (0) target = $region33
    $region32: #{tpu_custom_call.1} parent=1 // pred_region
      %72 = dma.done [#allocation6], 4096
    $region33: #{tpu_custom_call.1} parent=1 // pred_fallthru
      _
    // Predicated region
    $region34: #{tpu_custom_call.1} parent=1 // pred_check
      _
    $region35: #{tpu_custom_call.1} parent=1 // pred_check_branch
      %74 = sbr.rel (0) target = $region37
    $region36: #{tpu_custom_call.1} parent=1 // pred_region
      %75 = dma.done [#allocation6], 2048
    $region37: #{tpu_custom_call.1} parent=1 // pred_fallthru
      _
    // Predicated region
    $region38: #{tpu_custom_call.1} parent=1 // pred_check
      _
    $region39: #{tpu_custom_call.1} parent=1 // pred_check_branch
      %77 = sbr.rel (0) target = $region41
    $region40: #{tpu_custom_call.1} parent=1 // pred_region
      %78 = dma.done [#allocation9], 1024
    $region41: #{tpu_custom_call.1} parent=1 // pred_fallthru
      _
    %v80 = vld [vmem:[#allocation2] sm:$0xff]
    %v81 = vld [vmem:[#allocation2 + $0x8] sm:$0xff]
    %v82 = vld [vmem:[#allocation2 + $0x10] sm:$0xff]
    %v83 = vld [vmem:[#allocation2 + $0x18] sm:$0xff]
    %v84 = vld [vmem:[#allocation2 + $0x20] sm:$0xff]
    %v85 = vld [vmem:[#allocation2 + $0x28] sm:$0xff]
    %v86 = vld [vmem:[#allocation2 + $0x30] sm:$0xff]
    %v87 = vld [vmem:[#allocation2 + $0x38] sm:$0xff]
    %v88 = vld [vmem:[#allocation2 + $0x40] sm:$0xff]
    %v89 = vld [vmem:[#allocation2 + $0x48] sm:$0xff]
    %v90 = vld [vmem:[#allocation2 + $0x50] sm:$0xff]
    %v91 = vld [vmem:[#allocation2 + $0x58] sm:$0xff]
    %v92 = vld [vmem:[#allocation2 + $0x60] sm:$0xff]
    %v93 = vld [vmem:[#allocation2 + $0x68] sm:$0xff]
    %v94 = vld [vmem:[#allocation2 + $0x70] sm:$0xff]
    %v95 = vld [vmem:[#allocation2 + $0x78] sm:$0xff]
    %v96 = vld [vmem:[#allocation2 + $0x80] sm:$0xff]
    %v97 = vld [vmem:[#allocation2 + $0x88] sm:$0xff]
    %v98 = vld [vmem:[#allocation2 + $0x90] sm:$0xff]
    %v99 = vld [vmem:[#allocation2 + $0x98] sm:$0xff]
    %v100 = vld [vmem:[#allocation2 + $0xa0] sm:$0xff]
    %v101 = vld [vmem:[#allocation2 + $0xa8] sm:$0xff]
    %v102 = vld [vmem:[#allocation2 + $0xb0] sm:$0xff]
    %v103 = vld [vmem:[#allocation2 + $0xb8] sm:$0xff]
    %v104 = vld [vmem:[#allocation2 + $0xc0] sm:$0xff]
    %v105 = vld [vmem:[#allocation2 + $0xc8] sm:$0xff]
    %v106 = vld [vmem:[#allocation2 + $0xd0] sm:$0xff]
    %v107 = vld [vmem:[#allocation2 + $0xd8] sm:$0xff]
    %v108 = vld [vmem:[#allocation2 + $0xe0] sm:$0xff]
    %v109 = vld [vmem:[#allocation2 + $0xe8] sm:$0xff]
    %v110 = vld [vmem:[#allocation2 + $0xf0] sm:$0xff]
    %v111 = vld [vmem:[#allocation2 + $0xf8] sm:$0xff]
    %v112 = vld [vmem:[#allocation5] sm:$0xff]
    %v113 = vld [vmem:[#allocation5 + $0x8] sm:$0xff]
    %v114 = vld [vmem:[#allocation5 + $0x10] sm:$0xff]
    %v115 = vld [vmem:[#allocation5 + $0x18] sm:$0xff]
    %v116 = vld [vmem:[#allocation5 + $0x20] sm:$0xff]
    %v117 = vld [vmem:[#allocation5 + $0x28] sm:$0xff]
    %v118 = vld [vmem:[#allocation5 + $0x30] sm:$0xff]
    %v119 = vld [vmem:[#allocation5 + $0x38] sm:$0xff]
    %v120 = vld [vmem:[#allocation5 + $0x40] sm:$0xff]
    %v121 = vld [vmem:[#allocation5 + $0x48] sm:$0xff]
    %v122 = vld [vmem:[#allocation5 + $0x50] sm:$0xff]
    %v123 = vld [vmem:[#allocation5 + $0x58] sm:$0xff]
    %v124 = vld [vmem:[#allocation5 + $0x60] sm:$0xff]
    %v125 = vld [vmem:[#allocation5 + $0x68] sm:$0xff]
    %v126 = vld [vmem:[#allocation5 + $0x70] sm:$0xff]
    %v127 = vld [vmem:[#allocation5 + $0x78] sm:$0xff]
    %v128 = vld [vmem:[#allocation5 + $0x80] sm:$0xff]
    %v129 = vld [vmem:[#allocation5 + $0x88] sm:$0xff]
    %v130 = vld [vmem:[#allocation5 + $0x90] sm:$0xff]
    %v131 = vld [vmem:[#allocation5 + $0x98] sm:$0xff]
    %v132 = vld [vmem:[#allocation5 + $0xa0] sm:$0xff]
    %v133 = vld [vmem:[#allocation5 + $0xa8] sm:$0xff]
    %v134 = vld [vmem:[#allocation5 + $0xb0] sm:$0xff]
    %v135 = vld [vmem:[#allocation5 + $0xb8] sm:$0xff]
    %v136 = vld [vmem:[#allocation5 + $0xc0] sm:$0xff]
    %v137 = vld [vmem:[#allocation5 + $0xc8] sm:$0xff]
    %v138 = vld [vmem:[#allocation5 + $0xd0] sm:$0xff]
    %v139 = vld [vmem:[#allocation5 + $0xd8] sm:$0xff]
    %v140 = vld [vmem:[#allocation5 + $0xe0] sm:$0xff]
    %v141 = vld [vmem:[#allocation5 + $0xe8] sm:$0xff]
    %v142 = vld [vmem:[#allocation5 + $0xf0] sm:$0xff]
    %v143 = vld [vmem:[#allocation5 + $0xf8] sm:$0xff]
    %v144 = vxor.u32 %v112, 2147483648
    %v145 = vxor.u32 %v113, 2147483648
    %v146 = vxor.u32 %v114, 2147483648
    %v147 = vxor.u32 %v115, 2147483648
    %v148 = vxor.u32 %v116, 2147483648
    %v149 = vxor.u32 %v117, 2147483648
    %v150 = vxor.u32 %v118, 2147483648
    %v151 = vxor.u32 %v119, 2147483648
    %v152 = vxor.u32 %v120, 2147483648
    %v153 = vxor.u32 %v121, 2147483648
    %v154 = vxor.u32 %v122, 2147483648
    %v155 = vxor.u32 %v123, 2147483648
    %v156 = vxor.u32 %v124, 2147483648
    %v157 = vxor.u32 %v125, 2147483648
    %v158 = vxor.u32 %v126, 2147483648
    %v159 = vxor.u32 %v127, 2147483648
    %v160 = vxor.u32 %v128, 2147483648
    %v161 = vxor.u32 %v129, 2147483648
    %v162 = vxor.u32 %v130, 2147483648
    %v163 = vxor.u32 %v131, 2147483648
    %v164 = vxor.u32 %v132, 2147483648
    %v165 = vxor.u32 %v133, 2147483648
    %v166 = vxor.u32 %v134, 2147483648
    %v167 = vxor.u32 %v135, 2147483648
    %v168 = vxor.u32 %v136, 2147483648
    %v169 = vxor.u32 %v137, 2147483648
    %v170 = vxor.u32 %v138, 2147483648
    %v171 = vxor.u32 %v139, 2147483648
    %v172 = vxor.u32 %v140, 2147483648
    %v173 = vxor.u32 %v141, 2147483648
    %v174 = vxor.u32 %v142, 2147483648
    %v175 = vxor.u32 %v143, 2147483648
    %v176 = vmul.f32 %v144, 1.442695
    %v177 = vpow.pop %v176
    %v178 = vmul.f32 %v145, 1.442695
    %v179 = vpow.pop %v178
    %v180 = vmul.f32 %v146, 1.442695
    %v181 = vpow.pop %v180
    %v182 = vmul.f32 %v147, 1.442695
    %v183 = vpow.pop %v182
    %v184 = vmul.f32 %v148, 1.442695
    %v185 = vpow.pop %v184
    %v186 = vmul.f32 %v149, 1.442695
    %v187 = vpow.pop %v186
    %v188 = vmul.f32 %v150, 1.442695
    %v189 = vpow.pop %v188
    %v190 = vmul.f32 %v151, 1.442695
    %v191 = vpow.pop %v190
    %v192 = vmul.f32 %v152, 1.442695
    %v193 = vpow.pop %v192
    %v194 = vmul.f32 %v153, 1.442695
    %v195 = vpow.pop %v194
    %v196 = vmul.f32 %v154, 1.442695
    %v197 = vpow.pop %v196
    %v198 = vmul.f32 %v155, 1.442695
    %v199 = vpow.pop %v198
    %v200 = vmul.f32 %v156, 1.442695
    %v201 = vpow.pop %v200
    %v202 = vmul.f32 %v157, 1.442695
    %v203 = vpow.pop %v202
    %v204 = vmul.f32 %v158, 1.442695
    %v205 = vpow.pop %v204
    %v206 = vmul.f32 %v159, 1.442695
    %v207 = vpow.pop %v206
    %v208 = vmul.f32 %v160, 1.442695
    %v209 = vpow.pop %v208
    %v210 = vmul.f32 %v161, 1.442695
    %v211 = vpow.pop %v210
    %v212 = vmul.f32 %v162, 1.442695
    %v213 = vpow.pop %v212
    %v214 = vmul.f32 %v163, 1.442695
    %v215 = vpow.pop %v214
    %v216 = vmul.f32 %v164, 1.442695
    %v217 = vpow.pop %v216
    %v218 = vmul.f32 %v165, 1.442695
    %v219 = vpow.pop %v218
    %v220 = vmul.f32 %v166, 1.442695
    %v221 = vpow.pop %v220
    %v222 = vmul.f32 %v167, 1.442695
    %v223 = vpow.pop %v222
    %v224 = vmul.f32 %v168, 1.442695
    %v225 = vpow.pop %v224
    %v226 = vmul.f32 %v169, 1.442695
    %v227 = vpow.pop %v226
    %v228 = vmul.f32 %v170, 1.442695
    %v229 = vpow.pop %v228
    %v230 = vmul.f32 %v171, 1.442695
    %v231 = vpow.pop %v230
    %v232 = vmul.f32 %v172, 1.442695
    %v233 = vpow.pop %v232
    %v234 = vmul.f32 %v173, 1.442695
    %v235 = vpow.pop %v234
    %v236 = vmul.f32 %v174, 1.442695
    %v237 = vpow.pop %v236
    %v238 = vmul.f32 %v175, 1.442695
    %v239 = vpow.pop %v238
    %v240 = vadd.f32 %v177, 1.0
    %v241 = vadd.f32 %v179, 1.0
    %v242 = vadd.f32 %v181, 1.0
    %v243 = vadd.f32 %v183, 1.0
    %v244 = vadd.f32 %v185, 1.0
    %v245 = vadd.f32 %v187, 1.0
    %v246 = vadd.f32 %v189, 1.0
    %v247 = vadd.f32 %v191, 1.0
    %v248 = vadd.f32 %v193, 1.0
    %v249 = vadd.f32 %v195, 1.0
    %v250 = vadd.f32 %v197, 1.0
    %v251 = vadd.f32 %v199, 1.0
    %v252 = vadd.f32 %v201, 1.0
    %v253 = vadd.f32 %v203, 1.0
    %v254 = vadd.f32 %v205, 1.0
    %v255 = vadd.f32 %v207, 1.0
    %v256 = vadd.f32 %v209, 1.0
    %v257 = vadd.f32 %v211, 1.0
    %v258 = vadd.f32 %v213, 1.0
    %v259 = vadd.f32 %v215, 1.0
    %v260 = vadd.f32 %v217, 1.0
    %v261 = vadd.f32 %v219, 1.0
    %v262 = vadd.f32 %v221, 1.0
    %v263 = vadd.f32 %v223, 1.0
    %v264 = vadd.f32 %v225, 1.0
    %v265 = vadd.f32 %v227, 1.0
    %v266 = vadd.f32 %v229, 1.0
    %v267 = vadd.f32 %v231, 1.0
    %v268 = vadd.f32 %v233, 1.0
    %v269 = vadd.f32 %v235, 1.0
    %v270 = vadd.f32 %v237, 1.0
    %v271 = vadd.f32 %v239, 1.0
    %v272 = vrcp.pop %v240
    %v273 = vmul.f32 1.0, %v272
    %v274 = vrcp.pop %v241
    %v275 = vmul.f32 1.0, %v274
    %v276 = vrcp.pop %v242
    %v277 = vmul.f32 1.0, %v276
    %v278 = vrcp.pop %v243
    %v279 = vmul.f32 1.0, %v278
    %v280 = vrcp.pop %v244
    %v281 = vmul.f32 1.0, %v280
    %v282 = vrcp.pop %v245
    %v283 = vmul.f32 1.0, %v282
    %v284 = vrcp.pop %v246
    %v285 = vmul.f32 1.0, %v284
    %v286 = vrcp.pop %v247
    %v287 = vmul.f32 1.0, %v286
    %v288 = vrcp.pop %v248
    %v289 = vmul.f32 1.0, %v288
    %v290 = vrcp.pop %v249
    %v291 = vmul.f32 1.0, %v290
    %v292 = vrcp.pop %v250
    %v293 = vmul.f32 1.0, %v292
    %v294 = vrcp.pop %v251
    %v295 = vmul.f32 1.0, %v294
    %v296 = vrcp.pop %v252
    %v297 = vmul.f32 1.0, %v296
    %v298 = vrcp.pop %v253
    %v299 = vmul.f32 1.0, %v298
    %v300 = vrcp.pop %v254
    %v301 = vmul.f32 1.0, %v300
    %v302 = vrcp.pop %v255
    %v303 = vmul.f32 1.0, %v302
    %v304 = vrcp.pop %v256
    %v305 = vmul.f32 1.0, %v304
    %v306 = vrcp.pop %v257
    %v307 = vmul.f32 1.0, %v306
    %v308 = vrcp.pop %v258
    %v309 = vmul.f32 1.0, %v308
    %v310 = vrcp.pop %v259
    %v311 = vmul.f32 1.0, %v310
    %v312 = vrcp.pop %v260
    %v313 = vmul.f32 1.0, %v312
    %v314 = vrcp.pop %v261
    %v315 = vmul.f32 1.0, %v314
    %v316 = vrcp.pop %v262
    %v317 = vmul.f32 1.0, %v316
    %v318 = vrcp.pop %v263
    %v319 = vmul.f32 1.0, %v318
    %v320 = vrcp.pop %v264
    %v321 = vmul.f32 1.0, %v320
    %v322 = vrcp.pop %v265
    %v323 = vmul.f32 1.0, %v322
    %v324 = vrcp.pop %v266
    %v325 = vmul.f32 1.0, %v324
    %v326 = vrcp.pop %v267
    %v327 = vmul.f32 1.0, %v326
    %v328 = vrcp.pop %v268
    %v329 = vmul.f32 1.0, %v328
    %v330 = vrcp.pop %v269
    %v331 = vmul.f32 1.0, %v330
    %v332 = vrcp.pop %v270
    %v333 = vmul.f32 1.0, %v332
    %v334 = vrcp.pop %v271
    %v335 = vmul.f32 1.0, %v334
    %v336 = vmul.f32 %v112, %v273
    %v337 = vmul.f32 %v113, %v275
    %v338 = vmul.f32 %v114, %v277
    %v339 = vmul.f32 %v115, %v279
    %v340 = vmul.f32 %v116, %v281
    %v341 = vmul.f32 %v117, %v283
    %v342 = vmul.f32 %v118, %v285
    %v343 = vmul.f32 %v119, %v287
    %v344 = vmul.f32 %v120, %v289
    %v345 = vmul.f32 %v121, %v291
    %v346 = vmul.f32 %v122, %v293
    %v347 = vmul.f32 %v123, %v295
    %v348 = vmul.f32 %v124, %v297
    %v349 = vmul.f32 %v125, %v299
    %v350 = vmul.f32 %v126, %v301
    %v351 = vmul.f32 %v127, %v303
    %v352 = vmul.f32 %v128, %v305
    %v353 = vmul.f32 %v129, %v307
    %v354 = vmul.f32 %v130, %v309
    %v355 = vmul.f32 %v131, %v311
    %v356 = vmul.f32 %v132, %v313
    %v357 = vmul.f32 %v133, %v315
    %v358 = vmul.f32 %v134, %v317
    %v359 = vmul.f32 %v135, %v319
    %v360 = vmul.f32 %v136, %v321
    %v361 = vmul.f32 %v137, %v323
    %v362 = vmul.f32 %v138, %v325
    %v363 = vmul.f32 %v139, %v327
    %v364 = vmul.f32 %v140, %v329
    %v365 = vmul.f32 %v141, %v331
    %v366 = vmul.f32 %v142, %v333
    %v367 = vmul.f32 %v143, %v335
    %v368 = vpack.c.bf16 %v337, %v336
    %v369 = vpack.c.bf16 %v339, %v338
    %v370 = vpack.c.bf16 %v341, %v340
    %v371 = vpack.c.bf16 %v343, %v342
    %v372 = vpack.c.bf16 %v345, %v344
    %v373 = vpack.c.bf16 %v347, %v346
    %v374 = vpack.c.bf16 %v349, %v348
    %v375 = vpack.c.bf16 %v351, %v350
    %v376 = vpack.c.bf16 %v353, %v352
    %v377 = vpack.c.bf16 %v355, %v354
    %v378 = vpack.c.bf16 %v357, %v356
    %v379 = vpack.c.bf16 %v359, %v358
    %v380 = vpack.c.bf16 %v361, %v360
    %v381 = vpack.c.bf16 %v363, %v362
    %v382 = vpack.c.bf16 %v365, %v364
    %v383 = vpack.c.bf16 %v367, %v366
    %v384 = vld [vmem:[#allocation7] sm:$0xff]
    %v385 = vld [vmem:[#allocation7 + $0x8] sm:$0xff]
    %v386 = vld [vmem:[#allocation7 + $0x10] sm:$0xff]
    %v387 = vld [vmem:[#allocation7 + $0x18] sm:$0xff]
    %v388 = vld [vmem:[#allocation7 + $0x20] sm:$0xff]
    %v389 = vld [vmem:[#allocation7 + $0x28] sm:$0xff]
    %v390 = vld [vmem:[#allocation7 + $0x30] sm:$0xff]
    %v391 = vld [vmem:[#allocation7 + $0x38] sm:$0xff]
    %v392 = vld [vmem:[#allocation7 + $0x40] sm:$0xff]
    %v393 = vld [vmem:[#allocation7 + $0x48] sm:$0xff]
    %v394 = vld [vmem:[#allocation7 + $0x50] sm:$0xff]
    %v395 = vld [vmem:[#allocation7 + $0x58] sm:$0xff]
    %v396 = vld [vmem:[#allocation7 + $0x60] sm:$0xff]
    %v397 = vld [vmem:[#allocation7 + $0x68] sm:$0xff]
    %v398 = vld [vmem:[#allocation7 + $0x70] sm:$0xff]
    %v399 = vld [vmem:[#allocation7 + $0x78] sm:$0xff]
    %v400 = vld [vmem:[%s3] sm:$0x3]
    %v402 = vlaneseq
    %v403 = vshrl.u32 %v402, 7
    %v404 = vsub.s32 0, %v403
    %v405 = vrot.slane %v400, %v404
    %v406 = vlaneseq
    %v407 = vshrl.u32 %v406, 7
    %v408 = vsub.s32 1, %v407
    %v409 = vrot.slane %v400, %v408
    %v428 = vunpack.c.l.b16 %v384
    %v429 = vunpack.c.h.b16 %v384
    %v430 = vunpack.c.l.b16 %v385
    %v431 = vunpack.c.h.b16 %v385
    %v432 = vunpack.c.l.b16 %v386
    %v433 = vunpack.c.h.b16 %v386
    %v434 = vunpack.c.l.b16 %v387
    %v435 = vunpack.c.h.b16 %v387
    %v436 = vunpack.c.l.b16 %v388
    %v437 = vunpack.c.h.b16 %v388
    %v438 = vunpack.c.l.b16 %v389
    %v439 = vunpack.c.h.b16 %v389
    %v440 = vunpack.c.l.b16 %v390
    %v441 = vunpack.c.h.b16 %v390
    %v442 = vunpack.c.l.b16 %v391
    %v443 = vunpack.c.h.b16 %v391
    %v444 = vunpack.c.l.b16 %v392
    %v445 = vunpack.c.h.b16 %v392
    %v446 = vunpack.c.l.b16 %v393
    %v447 = vunpack.c.h.b16 %v393
    %v448 = vunpack.c.l.b16 %v394
    %v449 = vunpack.c.h.b16 %v394
    %v450 = vunpack.c.l.b16 %v395
    %v451 = vunpack.c.h.b16 %v395
    %v452 = vunpack.c.l.b16 %v396
    %v453 = vunpack.c.h.b16 %v396
    %v454 = vunpack.c.l.b16 %v397
    %v455 = vunpack.c.h.b16 %v397
    %v456 = vunpack.c.l.b16 %v398
    %v457 = vunpack.c.h.b16 %v398
    %v458 = vunpack.c.l.b16 %v399
    %v459 = vunpack.c.h.b16 %v399
    %v460 = vpack.c.b16 %v430, %v428
    %v461 = vpack.c.b16 %v431, %v429
    %v462 = vpack.c.b16 %v434, %v432
    %v463 = vpack.c.b16 %v435, %v433
    %v464 = vpack.c.b16 %v438, %v436
    %v465 = vpack.c.b16 %v439, %v437
    %v466 = vpack.c.b16 %v442, %v440
    %v467 = vpack.c.b16 %v443, %v441
    %v468 = vpack.c.b16 %v446, %v444
    %v469 = vpack.c.b16 %v447, %v445
    %v470 = vpack.c.b16 %v450, %v448
    %v471 = vpack.c.b16 %v451, %v449
    %v472 = vpack.c.b16 %v454, %v452
    %v473 = vpack.c.b16 %v455, %v453
    %v474 = vpack.c.b16 %v458, %v456
    %v475 = vpack.c.b16 %v459, %v457
    %492 = vmatprep.subr.bf16.mxu0 %v475
    %493 = vmatpush1.bf16.msra.mxu0 %v474
    %494 = vmatprep.subr.bf16.mxu0 %v473
    %495 = vmatpush1.bf16.msra.mxu0 %v472
    %496 = vmatprep.subr.bf16.mxu0 %v471
    %497 = vmatpush1.bf16.msra.mxu0 %v470
    %498 = vmatprep.subr.bf16.mxu0 %v469
    %499 = vmatpush1.bf16.msra.mxu0 %v468
    %500 = vmatprep.subr.bf16.mxu0 %v467
    %501 = vmatpush1.bf16.msra.mxu0 %v466
    %502 = vmatprep.subr.bf16.mxu0 %v465
    %503 = vmatpush1.bf16.msra.mxu0 %v464
    %504 = vmatprep.subr.bf16.mxu0 %v463
    %505 = vmatpush1.bf16.msra.mxu0 %v462
    %506 = vmatprep.subr.bf16.mxu0 %v461
    %507 = vmatpush1.bf16.msra.mxu0 %v460
    %508 = vmatprep.subr.bf16.mxu0 0
    %509 = vmatpush2.bf16.msra.mxu0 0
    %510 = vmatprep.subr.bf16.mxu0 0
    %511 = vmatpush2.bf16.msra.mxu0 0
    %512 = vmatprep.subr.bf16.mxu0 0
    %513 = vmatpush2.bf16.msra.mxu0 0
    %514 = vmatprep.subr.bf16.mxu0 0
    %515 = vmatpush2.bf16.msra.mxu0 0
    %516 = vmatprep.subr.bf16.mxu0 0
    %517 = vmatpush2.bf16.msra.mxu0 0
    %518 = vmatprep.subr.bf16.mxu0 0
    %519 = vmatpush2.bf16.msra.mxu0 0
    %520 = vmatprep.subr.bf16.mxu0 0
    %521 = vmatpush2.bf16.msra.mxu0 0
    %522 = vmatprep.subr.bf16.mxu0 0
    %523 = vmatpush2.bf16.msra.mxu0 0
    %524 = vmatprep.mubr.bf16.mxu0 0
    %525 = vmatmul.mubr.bf16.gmra.mxu0 %v368
    %v526 = vpop.f32.mrf.mxu0
    %v527 = vadd.f32 %v405, %v526
    %v528 = vpop.f32.mrf.mxu0
    %v529 = vadd.f32 %v409, %v528
    %v530 = vpop.f32.mrf.mxu0
    %v531 = vadd.f32 %v405, %v530
    %v532 = vpop.f32.mrf.mxu0
    %v533 = vadd.f32 %v409, %v532
    %534 = vmatprep.mubr.bf16.mxu0 0
    %535 = vmatmul.mubr.bf16.gmra.mxu0 %v369
    %v536 = vpop.f32.mrf.mxu0
    %v537 = vadd.f32 %v405, %v536
    %v538 = vpop.f32.mrf.mxu0
    %v539 = vadd.f32 %v409, %v538
    %v540 = vpop.f32.mrf.mxu0
    %v541 = vadd.f32 %v405, %v540
    %v542 = vpop.f32.mrf.mxu0
    %v543 = vadd.f32 %v409, %v542
    %544 = vmatprep.mubr.bf16.mxu0 0
    %545 = vmatmul.mubr.bf16.gmra.mxu0 %v370
    %v546 = vpop.f32.mrf.mxu0
    %v547 = vadd.f32 %v405, %v546
    %v548 = vpop.f32.mrf.mxu0
    %v549 = vadd.f32 %v409, %v548
    %v550 = vpop.f32.mrf.mxu0
    %v551 = vadd.f32 %v405, %v550
    %v552 = vpop.f32.mrf.mxu0
    %v553 = vadd.f32 %v409, %v552
    %554 = vmatprep.mubr.bf16.mxu0 0
    %555 = vmatmul.mubr.bf16.gmra.mxu0 %v371
    %v556 = vpop.f32.mrf.mxu0
    %v557 = vadd.f32 %v405, %v556
    %v558 = vpop.f32.mrf.mxu0
    %v559 = vadd.f32 %v409, %v558
    %v560 = vpop.f32.mrf.mxu0
    %v561 = vadd.f32 %v405, %v560
    %v562 = vpop.f32.mrf.mxu0
    %v563 = vadd.f32 %v409, %v562
    %564 = vmatprep.mubr.bf16.mxu0 0
    %565 = vmatmul.mubr.bf16.gmra.mxu0 %v372
    %v566 = vpop.f32.mrf.mxu0
    %v567 = vadd.f32 %v405, %v566
    %v568 = vpop.f32.mrf.mxu0
    %v569 = vadd.f32 %v409, %v568
    %v570 = vpop.f32.mrf.mxu0
    %v571 = vadd.f32 %v405, %v570
    %v572 = vpop.f32.mrf.mxu0
    %v573 = vadd.f32 %v409, %v572
    %574 = vmatprep.mubr.bf16.mxu0 0
    %575 = vmatmul.mubr.bf16.gmra.mxu0 %v373
    %v576 = vpop.f32.mrf.mxu0
    %v577 = vadd.f32 %v405, %v576
    %v578 = vpop.f32.mrf.mxu0
    %v579 = vadd.f32 %v409, %v578
    %v580 = vpop.f32.mrf.mxu0
    %v581 = vadd.f32 %v405, %v580
    %v582 = vpop.f32.mrf.mxu0
    %v583 = vadd.f32 %v409, %v582
    %584 = vmatprep.mubr.bf16.mxu0 0
    %585 = vmatmul.mubr.bf16.gmra.mxu0 %v374
    %v586 = vpop.f32.mrf.mxu0
    %v587 = vadd.f32 %v405, %v586
    %v588 = vpop.f32.mrf.mxu0
    %v589 = vadd.f32 %v409, %v588
    %v590 = vpop.f32.mrf.mxu0
    %v591 = vadd.f32 %v405, %v590
    %v592 = vpop.f32.mrf.mxu0
    %v593 = vadd.f32 %v409, %v592
    %594 = vmatprep.mubr.bf16.mxu0 0
    %595 = vmatmul.mubr.bf16.gmra.mxu0 %v375
    %v596 = vpop.f32.mrf.mxu0
    %v597 = vadd.f32 %v405, %v596
    %v598 = vpop.f32.mrf.mxu0
    %v599 = vadd.f32 %v409, %v598
    %v600 = vpop.f32.mrf.mxu0
    %v601 = vadd.f32 %v405, %v600
    %v602 = vpop.f32.mrf.mxu0
    %v603 = vadd.f32 %v409, %v602
    %604 = vmatprep.mubr.bf16.mxu0 0
    %605 = vmatmul.mubr.bf16.gmra.mxu0 %v376
    %v606 = vpop.f32.mrf.mxu0
    %v607 = vadd.f32 %v405, %v606
    %v608 = vpop.f32.mrf.mxu0
    %v609 = vadd.f32 %v409, %v608
    %v610 = vpop.f32.mrf.mxu0
    %v611 = vadd.f32 %v405, %v610
    %v612 = vpop.f32.mrf.mxu0
    %v613 = vadd.f32 %v409, %v612
    %614 = vmatprep.mubr.bf16.mxu0 0
    %615 = vmatmul.mubr.bf16.gmra.mxu0 %v377
    %v616 = vpop.f32.mrf.mxu0
    %v617 = vadd.f32 %v405, %v616
    %v618 = vpop.f32.mrf.mxu0
    %v619 = vadd.f32 %v409, %v618
    %v620 = vpop.f32.mrf.mxu0
    %v621 = vadd.f32 %v405, %v620
    %v622 = vpop.f32.mrf.mxu0
    %v623 = vadd.f32 %v409, %v622
    %624 = vmatprep.mubr.bf16.mxu0 0
    %625 = vmatmul.mubr.bf16.gmra.mxu0 %v378
    %v626 = vpop.f32.mrf.mxu0
    %v627 = vadd.f32 %v405, %v626
    %v628 = vpop.f32.mrf.mxu0
    %v629 = vadd.f32 %v409, %v628
    %v630 = vpop.f32.mrf.mxu0
    %v631 = vadd.f32 %v405, %v630
    %v632 = vpop.f32.mrf.mxu0
    %v633 = vadd.f32 %v409, %v632
    %634 = vmatprep.mubr.bf16.mxu0 0
    %635 = vmatmul.mubr.bf16.gmra.mxu0 %v379
    %v636 = vpop.f32.mrf.mxu0
    %v637 = vadd.f32 %v405, %v636
    %v638 = vpop.f32.mrf.mxu0
    %v639 = vadd.f32 %v409, %v638
    %v640 = vpop.f32.mrf.mxu0
    %v641 = vadd.f32 %v405, %v640
    %v642 = vpop.f32.mrf.mxu0
    %v643 = vadd.f32 %v409, %v642
    %644 = vmatprep.mubr.bf16.mxu0 0
    %645 = vmatmul.mubr.bf16.gmra.mxu0 %v380
    %v646 = vpop.f32.mrf.mxu0
    %v647 = vadd.f32 %v405, %v646
    %v648 = vpop.f32.mrf.mxu0
    %v649 = vadd.f32 %v409, %v648
    %v650 = vpop.f32.mrf.mxu0
    %v651 = vadd.f32 %v405, %v650
    %v652 = vpop.f32.mrf.mxu0
    %v653 = vadd.f32 %v409, %v652
    %654 = vmatprep.mubr.bf16.mxu0 0
    %655 = vmatmul.mubr.bf16.gmra.mxu0 %v381
    %v656 = vpop.f32.mrf.mxu0
    %v657 = vadd.f32 %v405, %v656
    %v658 = vpop.f32.mrf.mxu0
    %v659 = vadd.f32 %v409, %v658
    %v660 = vpop.f32.mrf.mxu0
    %v661 = vadd.f32 %v405, %v660
    %v662 = vpop.f32.mrf.mxu0
    %v663 = vadd.f32 %v409, %v662
    %664 = vmatprep.mubr.bf16.mxu0 0
    %665 = vmatmul.mubr.bf16.gmra.mxu0 %v382
    %v666 = vpop.f32.mrf.mxu0
    %v667 = vadd.f32 %v405, %v666
    %v668 = vpop.f32.mrf.mxu0
    %v669 = vadd.f32 %v409, %v668
    %v670 = vpop.f32.mrf.mxu0
    %v671 = vadd.f32 %v405, %v670
    %v672 = vpop.f32.mrf.mxu0
    %v673 = vadd.f32 %v409, %v672
    %674 = vmatprep.mubr.bf16.mxu0 0
    %675 = vmatmul.mubr.bf16.gmra.mxu0 %v383
    %v676 = vpop.f32.mrf.mxu0
    %v677 = vadd.f32 %v405, %v676
    %v678 = vpop.f32.mrf.mxu0
    %v679 = vadd.f32 %v409, %v678
    %v680 = vpop.f32.mrf.mxu0
    %v681 = vadd.f32 %v405, %v680
    %v682 = vpop.f32.mrf.mxu0
    %v683 = vadd.f32 %v409, %v682
    %684 = vdwg.mxu0
    %685 = vadd.xlane.f32.xlu0 %v80
    %v686 = vpop.xlane.xlu0 %685
    %687 = vadd.xlane.f32.xlu0 %v81
    %v688 = vpop.xlane.xlu0 %687
    %689 = vadd.xlane.f32.xlu0 %v82
    %v690 = vpop.xlane.xlu0 %689
    %691 = vadd.xlane.f32.xlu0 %v83
    %v692 = vpop.xlane.xlu0 %691
    %693 = vadd.xlane.f32.xlu0 %v84
    %v694 = vpop.xlane.xlu0 %693
    %695 = vadd.xlane.f32.xlu0 %v85
    %v696 = vpop.xlane.xlu0 %695
    %697 = vadd.xlane.f32.xlu0 %v86
    %v698 = vpop.xlane.xlu0 %697
    %699 = vadd.xlane.f32.xlu0 %v87
    %v700 = vpop.xlane.xlu0 %699
    %701 = vadd.xlane.f32.xlu0 %v88
    %v702 = vpop.xlane.xlu0 %701
    %703 = vadd.xlane.f32.xlu0 %v89
    %v704 = vpop.xlane.xlu0 %703
    %705 = vadd.xlane.f32.xlu0 %v90
    %v706 = vpop.xlane.xlu0 %705
    %707 = vadd.xlane.f32.xlu0 %v91
    %v708 = vpop.xlane.xlu0 %707
    %709 = vadd.xlane.f32.xlu0 %v92
    %v710 = vpop.xlane.xlu0 %709
    %711 = vadd.xlane.f32.xlu0 %v93
    %v712 = vpop.xlane.xlu0 %711
    %713 = vadd.xlane.f32.xlu0 %v94
    %v714 = vpop.xlane.xlu0 %713
    %715 = vadd.xlane.f32.xlu0 %v95
    %v716 = vpop.xlane.xlu0 %715
    %717 = vadd.xlane.f32.xlu0 %v96
    %v718 = vpop.xlane.xlu0 %717
    %719 = vadd.xlane.f32.xlu0 %v97
    %v720 = vpop.xlane.xlu0 %719
    %721 = vadd.xlane.f32.xlu0 %v98
    %v722 = vpop.xlane.xlu0 %721
    %723 = vadd.xlane.f32.xlu0 %v99
    %v724 = vpop.xlane.xlu0 %723
    %725 = vadd.xlane.f32.xlu0 %v100
    %v726 = vpop.xlane.xlu0 %725
    %727 = vadd.xlane.f32.xlu0 %v101
    %v728 = vpop.xlane.xlu0 %727
    %729 = vadd.xlane.f32.xlu0 %v102
    %v730 = vpop.xlane.xlu0 %729
    %731 = vadd.xlane.f32.xlu0 %v103
    %v732 = vpop.xlane.xlu0 %731
    %733 = vadd.xlane.f32.xlu0 %v104
    %v734 = vpop.xlane.xlu0 %733
    %735 = vadd.xlane.f32.xlu0 %v105
    %v736 = vpop.xlane.xlu0 %735
    %737 = vadd.xlane.f32.xlu0 %v106
    %v738 = vpop.xlane.xlu0 %737
    %739 = vadd.xlane.f32.xlu0 %v107
    %v740 = vpop.xlane.xlu0 %739
    %741 = vadd.xlane.f32.xlu0 %v108
    %v742 = vpop.xlane.xlu0 %741
    %743 = vadd.xlane.f32.xlu0 %v109
    %v744 = vpop.xlane.xlu0 %743
    %745 = vadd.xlane.f32.xlu0 %v110
    %v746 = vpop.xlane.xlu0 %745
    %747 = vadd.xlane.f32.xlu0 %v111
    %v748 = vpop.xlane.xlu0 %747
    %v749 = vmul.f32 %v80, %v80
    %v750 = vmul.f32 %v81, %v81
    %v751 = vmul.f32 %v82, %v82
    %v752 = vmul.f32 %v83, %v83
    %v753 = vmul.f32 %v84, %v84
    %v754 = vmul.f32 %v85, %v85
    %v755 = vmul.f32 %v86, %v86
    %v756 = vmul.f32 %v87, %v87
    %v757 = vmul.f32 %v88, %v88
    %v758 = vmul.f32 %v89, %v89
    %v759 = vmul.f32 %v90, %v90
    %v760 = vmul.f32 %v91, %v91
    %v761 = vmul.f32 %v92, %v92
    %v762 = vmul.f32 %v93, %v93
    %v763 = vmul.f32 %v94, %v94
    %v764 = vmul.f32 %v95, %v95
    %v765 = vmul.f32 %v96, %v96
    %v766 = vmul.f32 %v97, %v97
    %v767 = vmul.f32 %v98, %v98
    %v768 = vmul.f32 %v99, %v99
    %v769 = vmul.f32 %v100, %v100
    %v770 = vmul.f32 %v101, %v101
    %v771 = vmul.f32 %v102, %v102
    %v772 = vmul.f32 %v103, %v103
    %v773 = vmul.f32 %v104, %v104
    %v774 = vmul.f32 %v105, %v105
    %v775 = vmul.f32 %v106, %v106
    %v776 = vmul.f32 %v107, %v107
    %v777 = vmul.f32 %v108, %v108
    %v778 = vmul.f32 %v109, %v109
    %v779 = vmul.f32 %v110, %v110
    %v780 = vmul.f32 %v111, %v111
    %781 = vadd.xlane.f32.xlu0 %v749
    %v782 = vpop.xlane.xlu0 %781
    %783 = vadd.xlane.f32.xlu0 %v750
    %v784 = vpop.xlane.xlu0 %783
    %785 = vadd.xlane.f32.xlu0 %v751
    %v786 = vpop.xlane.xlu0 %785
    %787 = vadd.xlane.f32.xlu0 %v752
    %v788 = vpop.xlane.xlu0 %787
    %789 = vadd.xlane.f32.xlu0 %v753
    %v790 = vpop.xlane.xlu0 %789
    %791 = vadd.xlane.f32.xlu0 %v754
    %v792 = vpop.xlane.xlu0 %791
    %793 = vadd.xlane.f32.xlu0 %v755
    %v794 = vpop.xlane.xlu0 %793
    %795 = vadd.xlane.f32.xlu0 %v756
    %v796 = vpop.xlane.xlu0 %795
    %797 = vadd.xlane.f32.xlu0 %v757
    %v798 = vpop.xlane.xlu0 %797
    %799 = vadd.xlane.f32.xlu0 %v758
    %v800 = vpop.xlane.xlu0 %799
    %801 = vadd.xlane.f32.xlu0 %v759
    %v802 = vpop.xlane.xlu0 %801
    %803 = vadd.xlane.f32.xlu0 %v760
    %v804 = vpop.xlane.xlu0 %803
    %805 = vadd.xlane.f32.xlu0 %v761
    %v806 = vpop.xlane.xlu0 %805
    %807 = vadd.xlane.f32.xlu0 %v762
    %v808 = vpop.xlane.xlu0 %807
    %809 = vadd.xlane.f32.xlu0 %v763
    %v810 = vpop.xlane.xlu0 %809
    %811 = vadd.xlane.f32.xlu0 %v764
    %v812 = vpop.xlane.xlu0 %811
    %813 = vadd.xlane.f32.xlu0 %v765
    %v814 = vpop.xlane.xlu0 %813
    %815 = vadd.xlane.f32.xlu0 %v766
    %v816 = vpop.xlane.xlu0 %815
    %817 = vadd.xlane.f32.xlu0 %v767
    %v818 = vpop.xlane.xlu0 %817
    %819 = vadd.xlane.f32.xlu0 %v768
    %v820 = vpop.xlane.xlu0 %819
    %821 = vadd.xlane.f32.xlu0 %v769
    %v822 = vpop.xlane.xlu0 %821
    %823 = vadd.xlane.f32.xlu0 %v770
    %v824 = vpop.xlane.xlu0 %823
    %825 = vadd.xlane.f32.xlu0 %v771
    %v826 = vpop.xlane.xlu0 %825
    %827 = vadd.xlane.f32.xlu0 %v772
    %v828 = vpop.xlane.xlu0 %827
    %829 = vadd.xlane.f32.xlu0 %v773
    %v830 = vpop.xlane.xlu0 %829
    %831 = vadd.xlane.f32.xlu0 %v774
    %v832 = vpop.xlane.xlu0 %831
    %833 = vadd.xlane.f32.xlu0 %v775
    %v834 = vpop.xlane.xlu0 %833
    %835 = vadd.xlane.f32.xlu0 %v776
    %v836 = vpop.xlane.xlu0 %835
    %837 = vadd.xlane.f32.xlu0 %v777
    %v838 = vpop.xlane.xlu0 %837
    %839 = vadd.xlane.f32.xlu0 %v778
    %v840 = vpop.xlane.xlu0 %839
    %841 = vadd.xlane.f32.xlu0 %v779
    %v842 = vpop.xlane.xlu0 %841
    %843 = vadd.xlane.f32.xlu0 %v780
    %v844 = vpop.xlane.xlu0 %843
    %v845 = vmul.f32 %v686, 0.03125
    %v846 = vmul.f32 %v688, 0.03125
    %v847 = vmul.f32 %v690, 0.03125
    %v848 = vmul.f32 %v692, 0.03125
    %v849 = vmul.f32 %v694, 0.03125
    %v850 = vmul.f32 %v696, 0.03125
    %v851 = vmul.f32 %v698, 0.03125
    %v852 = vmul.f32 %v700, 0.03125
    %v853 = vmul.f32 %v702, 0.03125
    %v854 = vmul.f32 %v704, 0.03125
    %v855 = vmul.f32 %v706, 0.03125
    %v856 = vmul.f32 %v708, 0.03125
    %v857 = vmul.f32 %v710, 0.03125
    %v858 = vmul.f32 %v712, 0.03125
    %v859 = vmul.f32 %v714, 0.03125
    %v860 = vmul.f32 %v716, 0.03125
    %v861 = vmul.f32 %v718, 0.03125
    %v862 = vmul.f32 %v720, 0.03125
    %v863 = vmul.f32 %v722, 0.03125
    %v864 = vmul.f32 %v724, 0.03125
    %v865 = vmul.f32 %v726, 0.03125
    %v866 = vmul.f32 %v728, 0.03125
    %v867 = vmul.f32 %v730, 0.03125
    %v868 = vmul.f32 %v732, 0.03125
    %v869 = vmul.f32 %v734, 0.03125
    %v870 = vmul.f32 %v736, 0.03125
    %v871 = vmul.f32 %v738, 0.03125
    %v872 = vmul.f32 %v740, 0.03125
    %v873 = vmul.f32 %v742, 0.03125
    %v874 = vmul.f32 %v744, 0.03125
    %v875 = vmul.f32 %v746, 0.03125
    %v876 = vmul.f32 %v748, 0.03125
    %v877 = vmul.f32 %v782, 0.03125
    %v878 = vmul.f32 %v784, 0.03125
    %v879 = vmul.f32 %v786, 0.03125
    %v880 = vmul.f32 %v788, 0.03125
    %v881 = vmul.f32 %v790, 0.03125
    %v882 = vmul.f32 %v792, 0.03125
    %v883 = vmul.f32 %v794, 0.03125
    %v884 = vmul.f32 %v796, 0.03125
    %v885 = vmul.f32 %v798, 0.03125
    %v886 = vmul.f32 %v800, 0.03125
    %v887 = vmul.f32 %v802, 0.03125
    %v888 = vmul.f32 %v804, 0.03125
    %v889 = vmul.f32 %v806, 0.03125
    %v890 = vmul.f32 %v808, 0.03125
    %v891 = vmul.f32 %v810, 0.03125
    %v892 = vmul.f32 %v812, 0.03125
    %v893 = vmul.f32 %v814, 0.03125
    %v894 = vmul.f32 %v816, 0.03125
    %v895 = vmul.f32 %v818, 0.03125
    %v896 = vmul.f32 %v820, 0.03125
    %v897 = vmul.f32 %v822, 0.03125
    %v898 = vmul.f32 %v824, 0.03125
    %v899 = vmul.f32 %v826, 0.03125
    %v900 = vmul.f32 %v828, 0.03125
    %v901 = vmul.f32 %v830, 0.03125
    %v902 = vmul.f32 %v832, 0.03125
    %v903 = vmul.f32 %v834, 0.03125
    %v904 = vmul.f32 %v836, 0.03125
    %v905 = vmul.f32 %v838, 0.03125
    %v906 = vmul.f32 %v840, 0.03125
    %v907 = vmul.f32 %v842, 0.03125
    %v908 = vmul.f32 %v844, 0.03125
    %v909 = vmul.f32 %v845, %v845
    %v910 = vmul.f32 %v846, %v846
    %v911 = vmul.f32 %v847, %v847
    %v912 = vmul.f32 %v848, %v848
    %v913 = vmul.f32 %v849, %v849
    %v914 = vmul.f32 %v850, %v850
    %v915 = vmul.f32 %v851, %v851
    %v916 = vmul.f32 %v852, %v852
    %v917 = vmul.f32 %v853, %v853
    %v918 = vmul.f32 %v854, %v854
    %v919 = vmul.f32 %v855, %v855
    %v920 = vmul.f32 %v856, %v856
    %v921 = vmul.f32 %v857, %v857
    %v922 = vmul.f32 %v858, %v858
    %v923 = vmul.f32 %v859, %v859
    %v924 = vmul.f32 %v860, %v860
    %v925 = vmul.f32 %v861, %v861
    %v926 = vmul.f32 %v862, %v862
    %v927 = vmul.f32 %v863, %v863
    %v928 = vmul.f32 %v864, %v864
    %v929 = vmul.f32 %v865, %v865
    %v930 = vmul.f32 %v866, %v866
    %v931 = vmul.f32 %v867, %v867
    %v932 = vmul.f32 %v868, %v868
    %v933 = vmul.f32 %v869, %v869
    %v934 = vmul.f32 %v870, %v870
    %v935 = vmul.f32 %v871, %v871
    %v936 = vmul.f32 %v872, %v872
    %v937 = vmul.f32 %v873, %v873
    %v938 = vmul.f32 %v874, %v874
    %v939 = vmul.f32 %v875, %v875
    %v940 = vmul.f32 %v876, %v876
    %v941 = vsub.f32 %v877, %v909
    %v942 = vsub.f32 %v878, %v910
    %v943 = vsub.f32 %v879, %v911
    %v944 = vsub.f32 %v880, %v912
    %v945 = vsub.f32 %v881, %v913
    %v946 = vsub.f32 %v882, %v914
    %v947 = vsub.f32 %v883, %v915
    %v948 = vsub.f32 %v884, %v916
    %v949 = vsub.f32 %v885, %v917
    %v950 = vsub.f32 %v886, %v918
    %v951 = vsub.f32 %v887, %v919
    %v952 = vsub.f32 %v888, %v920
    %v953 = vsub.f32 %v889, %v921
    %v954 = vsub.f32 %v890, %v922
    %v955 = vsub.f32 %v891, %v923
    %v956 = vsub.f32 %v892, %v924
    %v957 = vsub.f32 %v893, %v925
    %v958 = vsub.f32 %v894, %v926
    %v959 = vsub.f32 %v895, %v927
    %v960 = vsub.f32 %v896, %v928
    %v961 = vsub.f32 %v897, %v929
    %v962 = vsub.f32 %v898, %v930
    %v963 = vsub.f32 %v899, %v931
    %v964 = vsub.f32 %v900, %v932
    %v965 = vsub.f32 %v901, %v933
    %v966 = vsub.f32 %v902, %v934
    %v967 = vsub.f32 %v903, %v935
    %v968 = vsub.f32 %v904, %v936
    %v969 = vsub.f32 %v905, %v937
    %v970 = vsub.f32 %v906, %v938
    %v971 = vsub.f32 %v907, %v939
    %v972 = vsub.f32 %v908, %v940
    %v973 = vsub.f32 %v80, %v845
    %v974 = vsub.f32 %v81, %v846
    %v975 = vsub.f32 %v82, %v847
    %v976 = vsub.f32 %v83, %v848
    %v977 = vsub.f32 %v84, %v849
    %v978 = vsub.f32 %v85, %v850
    %v979 = vsub.f32 %v86, %v851
    %v980 = vsub.f32 %v87, %v852
    %v981 = vsub.f32 %v88, %v853
    %v982 = vsub.f32 %v89, %v854
    %v983 = vsub.f32 %v90, %v855
    %v984 = vsub.f32 %v91, %v856
    %v985 = vsub.f32 %v92, %v857
    %v986 = vsub.f32 %v93, %v858
    %v987 = vsub.f32 %v94, %v859
    %v988 = vsub.f32 %v95, %v860
    %v989 = vsub.f32 %v96, %v861
    %v990 = vsub.f32 %v97, %v862
    %v991 = vsub.f32 %v98, %v863
    %v992 = vsub.f32 %v99, %v864
    %v993 = vsub.f32 %v100, %v865
    %v994 = vsub.f32 %v101, %v866
    %v995 = vsub.f32 %v102, %v867
    %v996 = vsub.f32 %v103, %v868
    %v997 = vsub.f32 %v104, %v869
    %v998 = vsub.f32 %v105, %v870
    %v999 = vsub.f32 %v106, %v871
    %v1000 = vsub.f32 %v107, %v872
    %v1001 = vsub.f32 %v108, %v873
    %v1002 = vsub.f32 %v109, %v874
    %v1003 = vsub.f32 %v110, %v875
    %v1004 = vsub.f32 %v111, %v876
    %v1005 = vadd.f32 %v941, 1e-06
    %v1006 = vadd.f32 %v942, 1e-06
    %v1007 = vadd.f32 %v943, 1e-06
    %v1008 = vadd.f32 %v944, 1e-06
    %v1009 = vadd.f32 %v945, 1e-06
    %v1010 = vadd.f32 %v946, 1e-06
    %v1011 = vadd.f32 %v947, 1e-06
    %v1012 = vadd.f32 %v948, 1e-06
    %v1013 = vadd.f32 %v949, 1e-06
    %v1014 = vadd.f32 %v950, 1e-06
    %v1015 = vadd.f32 %v951, 1e-06
    %v1016 = vadd.f32 %v952, 1e-06
    %v1017 = vadd.f32 %v953, 1e-06
    %v1018 = vadd.f32 %v954, 1e-06
    %v1019 = vadd.f32 %v955, 1e-06
    %v1020 = vadd.f32 %v956, 1e-06
    %v1021 = vadd.f32 %v957, 1e-06
    %v1022 = vadd.f32 %v958, 1e-06
    %v1023 = vadd.f32 %v959, 1e-06
    %v1024 = vadd.f32 %v960, 1e-06
    %v1025 = vadd.f32 %v961, 1e-06
    %v1026 = vadd.f32 %v962, 1e-06
    %v1027 = vadd.f32 %v963, 1e-06
    %v1028 = vadd.f32 %v964, 1e-06
    %v1029 = vadd.f32 %v965, 1e-06
    %v1030 = vadd.f32 %v966, 1e-06
    %v1031 = vadd.f32 %v967, 1e-06
    %v1032 = vadd.f32 %v968, 1e-06
    %v1033 = vadd.f32 %v969, 1e-06
    %v1034 = vadd.f32 %v970, 1e-06
    %v1035 = vadd.f32 %v971, 1e-06
    %v1036 = vadd.f32 %v972, 1e-06
    %v1037 = vrsqrt.pop %v1005
    %v1038 = vrsqrt.pop %v1006
    %v1039 = vrsqrt.pop %v1007
    %v1040 = vrsqrt.pop %v1008
    %v1041 = vrsqrt.pop %v1009
    %v1042 = vrsqrt.pop %v1010
    %v1043 = vrsqrt.pop %v1011
    %v1044 = vrsqrt.pop %v1012
    %v1045 = vrsqrt.pop %v1013
    %v1046 = vrsqrt.pop %v1014
    %v1047 = vrsqrt.pop %v1015
    %v1048 = vrsqrt.pop %v1016
    %v1049 = vrsqrt.pop %v1017
    %v1050 = vrsqrt.pop %v1018
    %v1051 = vrsqrt.pop %v1019
    %v1052 = vrsqrt.pop %v1020
    %v1053 = vrsqrt.pop %v1021
    %v1054 = vrsqrt.pop %v1022
    %v1055 = vrsqrt.pop %v1023
    %v1056 = vrsqrt.pop %v1024
    %v1057 = vrsqrt.pop %v1025
    %v1058 = vrsqrt.pop %v1026
    %v1059 = vrsqrt.pop %v1027
    %v1060 = vrsqrt.pop %v1028
    %v1061 = vrsqrt.pop %v1029
    %v1062 = vrsqrt.pop %v1030
    %v1063 = vrsqrt.pop %v1031
    %v1064 = vrsqrt.pop %v1032
    %v1065 = vrsqrt.pop %v1033
    %v1066 = vrsqrt.pop %v1034
    %v1067 = vrsqrt.pop %v1035
    %v1068 = vrsqrt.pop %v1036
    %v1069 = vmul.f32 %v973, %v1037
    %v1070 = vmul.f32 %v974, %v1038
    %v1071 = vmul.f32 %v975, %v1039
    %v1072 = vmul.f32 %v976, %v1040
    %v1073 = vmul.f32 %v977, %v1041
    %v1074 = vmul.f32 %v978, %v1042
    %v1075 = vmul.f32 %v979, %v1043
    %v1076 = vmul.f32 %v980, %v1044
    %v1077 = vmul.f32 %v981, %v1045
    %v1078 = vmul.f32 %v982, %v1046
    %v1079 = vmul.f32 %v983, %v1047
    %v1080 = vmul.f32 %v984, %v1048
    %v1081 = vmul.f32 %v985, %v1049
    %v1082 = vmul.f32 %v986, %v1050
    %v1083 = vmul.f32 %v987, %v1051
    %v1084 = vmul.f32 %v988, %v1052
    %v1085 = vmul.f32 %v989, %v1053
    %v1086 = vmul.f32 %v990, %v1054
    %v1087 = vmul.f32 %v991, %v1055
    %v1088 = vmul.f32 %v992, %v1056
    %v1089 = vmul.f32 %v993, %v1057
    %v1090 = vmul.f32 %v994, %v1058
    %v1091 = vmul.f32 %v995, %v1059
    %v1092 = vmul.f32 %v996, %v1060
    %v1093 = vmul.f32 %v997, %v1061
    %v1094 = vmul.f32 %v998, %v1062
    %v1095 = vmul.f32 %v999, %v1063
    %v1096 = vmul.f32 %v1000, %v1064
    %v1097 = vmul.f32 %v1001, %v1065
    %v1098 = vmul.f32 %v1002, %v1066
    %v1099 = vmul.f32 %v1003, %v1067
    %v1100 = vmul.f32 %v1004, %v1068
    %v1101 = vadd.f32 %v529, 1.0
    %v1102 = vadd.f32 %v533, 1.0
    %v1103 = vadd.f32 %v539, 1.0
    %v1104 = vadd.f32 %v543, 1.0
    %v1105 = vadd.f32 %v549, 1.0
    %v1106 = vadd.f32 %v553, 1.0
    %v1107 = vadd.f32 %v559, 1.0
    %v1108 = vadd.f32 %v563, 1.0
    %v1109 = vadd.f32 %v569, 1.0
    %v1110 = vadd.f32 %v573, 1.0
    %v1111 = vadd.f32 %v579, 1.0
    %v1112 = vadd.f32 %v583, 1.0
    %v1113 = vadd.f32 %v589, 1.0
    %v1114 = vadd.f32 %v593, 1.0
    %v1115 = vadd.f32 %v599, 1.0
    %v1116 = vadd.f32 %v603, 1.0
    %v1117 = vadd.f32 %v609, 1.0
    %v1118 = vadd.f32 %v613, 1.0
    %v1119 = vadd.f32 %v619, 1.0
    %v1120 = vadd.f32 %v623, 1.0
    %v1121 = vadd.f32 %v629, 1.0
    %v1122 = vadd.f32 %v633, 1.0
    %v1123 = vadd.f32 %v639, 1.0
    %v1124 = vadd.f32 %v643, 1.0
    %v1125 = vadd.f32 %v649, 1.0
    %v1126 = vadd.f32 %v653, 1.0
    %v1127 = vadd.f32 %v659, 1.0
    %v1128 = vadd.f32 %v663, 1.0
    %v1129 = vadd.f32 %v669, 1.0
    %v1130 = vadd.f32 %v673, 1.0
    %v1131 = vadd.f32 %v679, 1.0
    %v1132 = vadd.f32 %v683, 1.0
    %v1133 = vmul.f32 %v1069, %v1101
    %v1134 = vmul.f32 %v1070, %v1102
    %v1135 = vmul.f32 %v1071, %v1103
    %v1136 = vmul.f32 %v1072, %v1104
    %v1137 = vmul.f32 %v1073, %v1105
    %v1138 = vmul.f32 %v1074, %v1106
    %v1139 = vmul.f32 %v1075, %v1107
    %v1140 = vmul.f32 %v1076, %v1108
    %v1141 = vmul.f32 %v1077, %v1109
    %v1142 = vmul.f32 %v1078, %v1110
    %v1143 = vmul.f32 %v1079, %v1111
    %v1144 = vmul.f32 %v1080, %v1112
    %v1145 = vmul.f32 %v1081, %v1113
    %v1146 = vmul.f32 %v1082, %v1114
    %v1147 = vmul.f32 %v1083, %v1115
    %v1148 = vmul.f32 %v1084, %v1116
    %v1149 = vmul.f32 %v1085, %v1117
    %v1150 = vmul.f32 %v1086, %v1118
    %v1151 = vmul.f32 %v1087, %v1119
    %v1152 = vmul.f32 %v1088, %v1120
    %v1153 = vmul.f32 %v1089, %v1121
    %v1154 = vmul.f32 %v1090, %v1122
    %v1155 = vmul.f32 %v1091, %v1123
    %v1156 = vmul.f32 %v1092, %v1124
    %v1157 = vmul.f32 %v1093, %v1125
    %v1158 = vmul.f32 %v1094, %v1126
    %v1159 = vmul.f32 %v1095, %v1127
    %v1160 = vmul.f32 %v1096, %v1128
    %v1161 = vmul.f32 %v1097, %v1129
    %v1162 = vmul.f32 %v1098, %v1130
    %v1163 = vmul.f32 %v1099, %v1131
    %v1164 = vmul.f32 %v1100, %v1132
    %v1165 = vadd.f32 %v1133, %v527
    %v1166 = vadd.f32 %v1134, %v531
    %v1167 = vadd.f32 %v1135, %v537
    %v1168 = vadd.f32 %v1136, %v541
    %v1169 = vadd.f32 %v1137, %v547
    %v1170 = vadd.f32 %v1138, %v551
    %v1171 = vadd.f32 %v1139, %v557
    %v1172 = vadd.f32 %v1140, %v561
    %v1173 = vadd.f32 %v1141, %v567
    %v1174 = vadd.f32 %v1142, %v571
    %v1175 = vadd.f32 %v1143, %v577
    %v1176 = vadd.f32 %v1144, %v581
    %v1177 = vadd.f32 %v1145, %v587
    %v1178 = vadd.f32 %v1146, %v591
    %v1179 = vadd.f32 %v1147, %v597
    %v1180 = vadd.f32 %v1148, %v601
    %v1181 = vadd.f32 %v1149, %v607
    %v1182 = vadd.f32 %v1150, %v611
    %v1183 = vadd.f32 %v1151, %v617
    %v1184 = vadd.f32 %v1152, %v621
    %v1185 = vadd.f32 %v1153, %v627
    %v1186 = vadd.f32 %v1154, %v631
    %v1187 = vadd.f32 %v1155, %v637
    %v1188 = vadd.f32 %v1156, %v641
    %v1189 = vadd.f32 %v1157, %v647
    %v1190 = vadd.f32 %v1158, %v651
    %v1191 = vadd.f32 %v1159, %v657
    %v1192 = vadd.f32 %v1160, %v661
    %v1193 = vadd.f32 %v1161, %v667
    %v1194 = vadd.f32 %v1162, %v671
    %v1195 = vadd.f32 %v1163, %v677
    %v1196 = vadd.f32 %v1164, %v681
    %v1197 = vpack.c.bf16 %v1166, %v1165
    %v1198 = vpack.c.bf16 %v1168, %v1167
    %v1199 = vpack.c.bf16 %v1170, %v1169
    %v1200 = vpack.c.bf16 %v1172, %v1171
    %v1201 = vpack.c.bf16 %v1174, %v1173
    %v1202 = vpack.c.bf16 %v1176, %v1175
    %v1203 = vpack.c.bf16 %v1178, %v1177
    %v1204 = vpack.c.bf16 %v1180, %v1179
    %v1205 = vpack.c.bf16 %v1182, %v1181
    %v1206 = vpack.c.bf16 %v1184, %v1183
    %v1207 = vpack.c.bf16 %v1186, %v1185
    %v1208 = vpack.c.bf16 %v1188, %v1187
    %v1209 = vpack.c.bf16 %v1190, %v1189
    %v1210 = vpack.c.bf16 %v1192, %v1191
    %v1211 = vpack.c.bf16 %v1194, %v1193
    %v1212 = vpack.c.bf16 %v1196, %v1195
    %v1213 = vld [vmem:[#allocation8] sm:$0xf]
    %v1214 = vld [vmem:[#allocation8 + $0x4] sm:$0xf]
    %v1215 = vld [vmem:[#allocation8 + $0x8] sm:$0xf]
    %v1216 = vld [vmem:[#allocation8 + $0xc] sm:$0xf]
    %v1217 = vld [vmem:[#allocation8 + $0x10] sm:$0xf]
    %v1218 = vld [vmem:[#allocation8 + $0x14] sm:$0xf]
    %v1219 = vld [vmem:[#allocation8 + $0x18] sm:$0xf]
    %v1220 = vld [vmem:[#allocation8 + $0x1c] sm:$0xf]
    %v1221 = vld [vmem:[#allocation8 + $0x20] sm:$0xf]
    %v1222 = vld [vmem:[#allocation8 + $0x24] sm:$0xf]
    %v1223 = vld [vmem:[#allocation8 + $0x28] sm:$0xf]
    %v1224 = vld [vmem:[#allocation8 + $0x2c] sm:$0xf]
    %v1225 = vld [vmem:[#allocation8 + $0x30] sm:$0xf]
    %v1226 = vld [vmem:[#allocation8 + $0x34] sm:$0xf]
    %v1227 = vld [vmem:[#allocation8 + $0x38] sm:$0xf]
    %v1228 = vld [vmem:[#allocation8 + $0x3c] sm:$0xf]
    %v1229 = vld [vmem:[%s5] sm:$0x1]
    %v1231 = vlaneseq
    %v1232 = vshrl.u32 %v1231, 7
    %v1233 = vsub.s32 0, %v1232
    %v1234 = vrot.slane %v1229, %v1233
    %v1252 = vunpack.c.l.b16 %v1213
    %v1253 = vunpack.c.l.b16 %v1214
    %v1254 = vunpack.c.l.b16 %v1215
    %v1255 = vunpack.c.l.b16 %v1216
    %v1256 = vunpack.c.l.b16 %v1217
    %v1257 = vunpack.c.l.b16 %v1218
    %v1258 = vunpack.c.l.b16 %v1219
    %v1259 = vunpack.c.l.b16 %v1220
    %v1260 = vunpack.c.l.b16 %v1221
    %v1261 = vunpack.c.l.b16 %v1222
    %v1262 = vunpack.c.l.b16 %v1223
    %v1263 = vunpack.c.l.b16 %v1224
    %v1264 = vunpack.c.l.b16 %v1225
    %v1265 = vunpack.c.l.b16 %v1226
    %v1266 = vunpack.c.l.b16 %v1227
    %v1267 = vunpack.c.l.b16 %v1228
    %v1268 = vpack.c.b16 %v1253, %v1252
    %v1269 = vpack.c.b16 %v1255, %v1254
    %v1270 = vpack.c.b16 %v1257, %v1256
    %v1271 = vpack.c.b16 %v1259, %v1258
    %v1272 = vpack.c.b16 %v1261, %v1260
    %v1273 = vpack.c.b16 %v1263, %v1262
    %v1274 = vpack.c.b16 %v1265, %v1264
    %v1275 = vpack.c.b16 %v1267, %v1266
    %1284 = vmatprep.subr.bf16.mxu0 0
    %1285 = vmatpush1.bf16.msra.mxu0 %v1275
    %1286 = vmatprep.subr.bf16.mxu0 0
    %1287 = vmatpush1.bf16.msra.mxu0 %v1274
    %1288 = vmatprep.subr.bf16.mxu0 0
    %1289 = vmatpush1.bf16.msra.mxu0 %v1273
    %1290 = vmatprep.subr.bf16.mxu0 0
    %1291 = vmatpush1.bf16.msra.mxu0 %v1272
    %1292 = vmatprep.subr.bf16.mxu0 0
    %1293 = vmatpush1.bf16.msra.mxu0 %v1271
    %1294 = vmatprep.subr.bf16.mxu0 0
    %1295 = vmatpush1.bf16.msra.mxu0 %v1270
    %1296 = vmatprep.subr.bf16.mxu0 0
    %1297 = vmatpush1.bf16.msra.mxu0 %v1269
    %1298 = vmatprep.subr.bf16.mxu0 0
    %1299 = vmatpush1.bf16.msra.mxu0 %v1268
    %1300 = vmatprep.subr.bf16.mxu0 0
    %1301 = vmatpush2.bf16.msra.mxu0 0
    %1302 = vmatprep.subr.bf16.mxu0 0
    %1303 = vmatpush2.bf16.msra.mxu0 0
    %1304 = vmatprep.subr.bf16.mxu0 0
    %1305 = vmatpush2.bf16.msra.mxu0 0
    %1306 = vmatprep.subr.bf16.mxu0 0
    %1307 = vmatpush2.bf16.msra.mxu0 0
    %1308 = vmatprep.subr.bf16.mxu0 0
    %1309 = vmatpush2.bf16.msra.mxu0 0
    %1310 = vmatprep.subr.bf16.mxu0 0
    %1311 = vmatpush2.bf16.msra.mxu0 0
    %1312 = vmatprep.subr.bf16.mxu0 0
    %1313 = vmatpush2.bf16.msra.mxu0 0
    %1314 = vmatprep.subr.bf16.mxu0 0
    %1315 = vmatpush2.bf16.msra.mxu0 0
    %1316 = vmatprep.mubr.bf16.mxu0 0
    %1317 = vmatmul.mubr.bf16.gmra.mxu0 %v1197
    %v1318 = vpop.f32.mrf.mxu0
    %v1319 = vadd.f32 %v1234, %v1318
    %v1320 = vpop.f32.mrf.mxu0
    %v1321 = vpop.f32.mrf.mxu0
    %v1322 = vadd.f32 %v1234, %v1321
    %v1323 = vpop.f32.mrf.mxu0
    %1324 = vmatprep.mubr.bf16.mxu0 0
    %1325 = vmatmul.mubr.bf16.gmra.mxu0 %v1198
    %v1326 = vpop.f32.mrf.mxu0
    %v1327 = vadd.f32 %v1234, %v1326
    %v1328 = vpop.f32.mrf.mxu0
    %v1329 = vpop.f32.mrf.mxu0
    %v1330 = vadd.f32 %v1234, %v1329
    %v1331 = vpop.f32.mrf.mxu0
    %1332 = vmatprep.mubr.bf16.mxu0 0
    %1333 = vmatmul.mubr.bf16.gmra.mxu0 %v1199
    %v1334 = vpop.f32.mrf.mxu0
    %v1335 = vadd.f32 %v1234, %v1334
    %v1336 = vpop.f32.mrf.mxu0
    %v1337 = vpop.f32.mrf.mxu0
    %v1338 = vadd.f32 %v1234, %v1337
    %v1339 = vpop.f32.mrf.mxu0
    %1340 = vmatprep.mubr.bf16.mxu0 0
    %1341 = vmatmul.mubr.bf16.gmra.mxu0 %v1200
    %v1342 = vpop.f32.mrf.mxu0
    %v1343 = vadd.f32 %v1234, %v1342
    %v1344 = vpop.f32.mrf.mxu0
    %v1345 = vpop.f32.mrf.mxu0
    %v1346 = vadd.f32 %v1234, %v1345
    %v1347 = vpop.f32.mrf.mxu0
    %1348 = vmatprep.mubr.bf16.mxu0 0
    %1349 = vmatmul.mubr.bf16.gmra.mxu0 %v1201
    %v1350 = vpop.f32.mrf.mxu0
    %v1351 = vadd.f32 %v1234, %v1350
    %v1352 = vpop.f32.mrf.mxu0
    %v1353 = vpop.f32.mrf.mxu0
    %v1354 = vadd.f32 %v1234, %v1353
    %v1355 = vpop.f32.mrf.mxu0
    %1356 = vmatprep.mubr.bf16.mxu0 0
    %1357 = vmatmul.mubr.bf16.gmra.mxu0 %v1202
    %v1358 = vpop.f32.mrf.mxu0
    %v1359 = vadd.f32 %v1234, %v1358
    %v1360 = vpop.f32.mrf.mxu0
    %v1361 = vpop.f32.mrf.mxu0
    %v1362 = vadd.f32 %v1234, %v1361
    %v1363 = vpop.f32.mrf.mxu0
    %1364 = vmatprep.mubr.bf16.mxu0 0
    %1365 = vmatmul.mubr.bf16.gmra.mxu0 %v1203
    %v1366 = vpop.f32.mrf.mxu0
    %v1367 = vadd.f32 %v1234, %v1366
    %v1368 = vpop.f32.mrf.mxu0
    %v1369 = vpop.f32.mrf.mxu0
    %v1370 = vadd.f32 %v1234, %v1369
    %v1371 = vpop.f32.mrf.mxu0
    %1372 = vmatprep.mubr.bf16.mxu0 0
    %1373 = vmatmul.mubr.bf16.gmra.mxu0 %v1204
    %v1374 = vpop.f32.mrf.mxu0
    %v1375 = vadd.f32 %v1234, %v1374
    %v1376 = vpop.f32.mrf.mxu0
    %v1377 = vpop.f32.mrf.mxu0
    %v1378 = vadd.f32 %v1234, %v1377
    %v1379 = vpop.f32.mrf.mxu0
    %1380 = vmatprep.mubr.bf16.mxu0 0
    %1381 = vmatmul.mubr.bf16.gmra.mxu0 %v1205
    %v1382 = vpop.f32.mrf.mxu0
    %v1383 = vadd.f32 %v1234, %v1382
    %v1384 = vpop.f32.mrf.mxu0
    %v1385 = vpop.f32.mrf.mxu0
    %v1386 = vadd.f32 %v1234, %v1385
    %v1387 = vpop.f32.mrf.mxu0
    %1388 = vmatprep.mubr.bf16.mxu0 0
    %1389 = vmatmul.mubr.bf16.gmra.mxu0 %v1206
    %v1390 = vpop.f32.mrf.mxu0
    %v1391 = vadd.f32 %v1234, %v1390
    %v1392 = vpop.f32.mrf.mxu0
    %v1393 = vpop.f32.mrf.mxu0
    %v1394 = vadd.f32 %v1234, %v1393
    %v1395 = vpop.f32.mrf.mxu0
    %1396 = vmatprep.mubr.bf16.mxu0 0
    %1397 = vmatmul.mubr.bf16.gmra.mxu0 %v1207
    %v1398 = vpop.f32.mrf.mxu0
    %v1399 = vadd.f32 %v1234, %v1398
    %v1400 = vpop.f32.mrf.mxu0
    %v1401 = vpop.f32.mrf.mxu0
    %v1402 = vadd.f32 %v1234, %v1401
    %v1403 = vpop.f32.mrf.mxu0
    %1404 = vmatprep.mubr.bf16.mxu0 0
    %1405 = vmatmul.mubr.bf16.gmra.mxu0 %v1208
    %v1406 = vpop.f32.mrf.mxu0
    %v1407 = vadd.f32 %v1234, %v1406
    %v1408 = vpop.f32.mrf.mxu0
    %v1409 = vpop.f32.mrf.mxu0
    %v1410 = vadd.f32 %v1234, %v1409
    %v1411 = vpop.f32.mrf.mxu0
    %1412 = vmatprep.mubr.bf16.mxu0 0
    %1413 = vmatmul.mubr.bf16.gmra.mxu0 %v1209
    %v1414 = vpop.f32.mrf.mxu0
    %v1415 = vadd.f32 %v1234, %v1414
    %v1416 = vpop.f32.mrf.mxu0
    %v1417 = vpop.f32.mrf.mxu0
    %v1418 = vadd.f32 %v1234, %v1417
    %v1419 = vpop.f32.mrf.mxu0
    %1420 = vmatprep.mubr.bf16.mxu0 0
    %1421 = vmatmul.mubr.bf16.gmra.mxu0 %v1210
    %v1422 = vpop.f32.mrf.mxu0
    %v1423 = vadd.f32 %v1234, %v1422
    %v1424 = vpop.f32.mrf.mxu0
    %v1425 = vpop.f32.mrf.mxu0
    %v1426 = vadd.f32 %v1234, %v1425
    %v1427 = vpop.f32.mrf.mxu0
    %1428 = vmatprep.mubr.bf16.mxu0 0
    %1429 = vmatmul.mubr.bf16.gmra.mxu0 %v1211
    %v1430 = vpop.f32.mrf.mxu0
    %v1431 = vadd.f32 %v1234, %v1430
    %v1432 = vpop.f32.mrf.mxu0
    %v1433 = vpop.f32.mrf.mxu0
    %v1434 = vadd.f32 %v1234, %v1433
    %v1435 = vpop.f32.mrf.mxu0
    %1436 = vmatprep.mubr.bf16.mxu0 0
    %1437 = vmatmul.mubr.bf16.gmra.mxu0 %v1212
    %v1438 = vpop.f32.mrf.mxu0
    %v1439 = vadd.f32 %v1234, %v1438
    %v1440 = vpop.f32.mrf.mxu0
    %v1441 = vpop.f32.mrf.mxu0
    %v1442 = vadd.f32 %v1234, %v1441
    %v1443 = vpop.f32.mrf.mxu0
    %1444 = vdwg.mxu0
    %1445 = vst [vmem:[#allocation10] sm:$0xff] %v1319
    %1446 = vst [vmem:[#allocation10 + $0x8] sm:$0xff] %v1322
    %1447 = vst [vmem:[#allocation10 + $0x10] sm:$0xff] %v1327
    %1448 = vst [vmem:[#allocation10 + $0x18] sm:$0xff] %v1330
    %1449 = vst [vmem:[#allocation10 + $0x20] sm:$0xff] %v1335
    %1450 = vst [vmem:[#allocation10 + $0x28] sm:$0xff] %v1338
    %1451 = vst [vmem:[#allocation10 + $0x30] sm:$0xff] %v1343
    %1452 = vst [vmem:[#allocation10 + $0x38] sm:$0xff] %v1346
    %1453 = vst [vmem:[#allocation10 + $0x40] sm:$0xff] %v1351
    %1454 = vst [vmem:[#allocation10 + $0x48] sm:$0xff] %v1354
    %1455 = vst [vmem:[#allocation10 + $0x50] sm:$0xff] %v1359
    %1456 = vst [vmem:[#allocation10 + $0x58] sm:$0xff] %v1362
    %1457 = vst [vmem:[#allocation10 + $0x60] sm:$0xff] %v1367
    %1458 = vst [vmem:[#allocation10 + $0x68] sm:$0xff] %v1370
    %1459 = vst [vmem:[#allocation10 + $0x70] sm:$0xff] %v1375
    %1460 = vst [vmem:[#allocation10 + $0x78] sm:$0xff] %v1378
    %1461 = vst [vmem:[#allocation10 + $0x80] sm:$0xff] %v1383
    %1462 = vst [vmem:[#allocation10 + $0x88] sm:$0xff] %v1386
    %1463 = vst [vmem:[#allocation10 + $0x90] sm:$0xff] %v1391
    %1464 = vst [vmem:[#allocation10 + $0x98] sm:$0xff] %v1394
    %1465 = vst [vmem:[#allocation10 + $0xa0] sm:$0xff] %v1399
    %1466 = vst [vmem:[#allocation10 + $0xa8] sm:$0xff] %v1402
    %1467 = vst [vmem:[#allocation10 + $0xb0] sm:$0xff] %v1407
    %1468 = vst [vmem:[#allocation10 + $0xb8] sm:$0xff] %v1410
    %1469 = vst [vmem:[#allocation10 + $0xc0] sm:$0xff] %v1415
    %1470 = vst [vmem:[#allocation10 + $0xc8] sm:$0xff] %v1418
    %1471 = vst [vmem:[#allocation10 + $0xd0] sm:$0xff] %v1423
    %1472 = vst [vmem:[#allocation10 + $0xd8] sm:$0xff] %v1426
    %1473 = vst [vmem:[#allocation10 + $0xe0] sm:$0xff] %v1431
    %1474 = vst [vmem:[#allocation10 + $0xe8] sm:$0xff] %v1434
    %1475 = vst [vmem:[#allocation10 + $0xf0] sm:$0xff] %v1439
    %1476 = vst [vmem:[#allocation10 + $0xf8] sm:$0xff] %v1442
    // Predicated region
    $region42: #{tpu_custom_call.1} parent=1 // pred_check
      _
    $region43: #{tpu_custom_call.1} parent=1 // pred_check_branch
      %1478 = sbr.rel (0) target = $region45
    $region44: #{tpu_custom_call.1} parent=1 // pred_region
      %s1480 = ssub.s32 4096, 4096
      %1481 = vsyncadd [#allocation4], %s1480
      %s1482 = sshll.u32 [#allocation10], 4
      %s1483 = int_to_ptr.vmem [resolvable:$true] %s1482
      %1488 = dma.vmem_to_hbm [thread:$0]  %s1483, 4096, %s6, [#allocation4], 128, 128, 8
    $region45: #{tpu_custom_call.1} parent=1 // pred_fallthru
      _
    // Predicated region
    $region46: #{tpu_custom_call.1} parent=1 // pred_check
      _
    $region47: #{tpu_custom_call.1} parent=1 // pred_check_branch
      %1490 = sbr.rel (0) target = $region49
    $region48: #{tpu_custom_call.1} parent=1 // pred_region
      %1491 = dma.done [#allocation4], 4096
    $region49: #{tpu_custom_call.1} parent=1 // pred_fallthru
      _
    %1492 = vsyncpa [#allocation3], 1
    %1493 = vsyncpa [#allocation6], 1
    %1494 = vsyncpa [#allocation9], 1
    %1495 = vsyncpa [#allocation4], 1

</llo_original>
